<compile_context>
chip_gen: v5e
topology: v5e:2x2
jax: 0.10.0
libtpu: 0.0.40
codegen_flags: <defaults>
</compile_context>

<pallas_src>
import functools

import numpy as np

import jax
import jax.numpy as jnp
from jax import lax
from jax.experimental import pallas as pl
from jax.experimental.pallas import tpu as pltpu


def _residual_stack_kernel(x_ref, t1_ref, t2_ref, o_ref, xpad_ref, *,
                           n_layers, r0):
    """Fused ResidualStack for one batch block (one grid step).

    x_ref    : (Bt*Hs, 2*W*Cin)          input, row-pair fused-lane layout, f32
    t1_ref   : (3, 2*W*Cin, 2*W*Cmid)    banded 3x3-conv weights (per super-row
                                         offset -1/0/+1), bf16
    t2_ref   : (2*W*Cmid, 2*W*Cout)      block-diagonal 1x1-conv weights, bf16
    o_ref    : (Bt*Hs, 2*W*Cout)         output (== input layout), f32
    xpad_ref : (Bt, r0+Hs+8, 2*W*Cin)    VMEM scratch: vertically padded
                                         ReLU(x) in bf16 (interior at rows
                                         [r0, r0+Hs), halo rows r0-1 / r0+Hs
                                         stay zero == conv zero-padding).
    """
    M, L_in = x_ref.shape                      # M = Bt*Hs (batch stacked into M)
    L_mid = t1_ref.shape[2]
    bt = xpad_ref.shape[0]
    hs = M // bt

    # Zero the scratch ONCE: it persists across grid steps, the halo super-rows
    # are never written afterwards (ReLU(0) == 0 keeps them a valid zero pad),
    # and the interior is fully rewritten every layer of every step.
    @pl.when(pl.program_id(0) == 0)
    def _():
        xpad_ref[...] = jnp.zeros_like(xpad_ref)

    # f32 residual carry, batch-stacked rows.
    x0 = x_ref[...].astype(jnp.float32)

    def layer(_, xcur):
        # First ReLU: cast to bf16 once per layer, lane-dense (128 lanes),
        # aligned interior store (lane 0, sublane offset r0).
        xpad_ref[:, r0:r0 + hs, :] = (
            jnp.maximum(xcur, 0.0).reshape(bt, hs, L_in).astype(xpad_ref.dtype))

        # 3x3 conv (stride 1, pad 1, no bias) as 3 banded matmuls over
        # super-row slabs: K = 2*W*Cin, N = 2*W*Cmid, M = Bt*Hs.
        acc = jnp.zeros((M, L_mid), dtype=jnp.float32)
        for d in range(3):                      # super-row offsets -1, 0, +1
            slab = xpad_ref[:, r0 - 1 + d:r0 - 1 + d + hs, :].reshape(M, L_in)
            acc = acc + jnp.dot(slab, t1_ref[d],
                                preferred_element_type=jnp.float32)

        # Second ReLU + 1x1 conv (block-diagonal matmul); the residual add is
        # folded into the f32 carry (no extra full-tile pass).
        mid = jnp.maximum(acc, 0.0).astype(t2_ref.dtype)
        return xcur + jnp.dot(mid, t2_ref[...],
                              preferred_element_type=jnp.float32)

    xcur = lax.fori_loop(0, n_layers, layer, x0, unroll=True)

    # Final ReLU of the stack; lane-dense store (2*W*Cout >= 128 lanes).
    o_ref[...] = jnp.maximum(xcur, 0.0).astype(o_ref.dtype)


def _banded_conv3x3_rowpair(w1_hwio, W):
    """(3,3,Cin,Cmid) HWIO -> (3, 2*W*Cin, 2*W*Cmid) banded ("Toeplitz")
    matrices over super-rows (pairs of image rows fused into the lane axis).

    Built with plain numpy on the host (no traced scatter ops).  The horizontal
    boundary is handled by clipping the band (no horizontal zero-pad lanes),
    the vertical boundary by the zero halo rows in the kernel scratch.
    """
    w1 = np.asarray(w1_hwio, dtype=np.float32)
    _, _, cin, cmid = w1.shape
    t1 = np.zeros((3, 2 * W * cin, 2 * W * cmid), dtype=np.float32)
    # (super-row offset index d, row-in-pair of input p_in, of output p_out)
    #   -> ky, from  ky = 2*(d-1) + p_in - p_out + 1.
    combos = {0: [(1, 0, 0)],
              1: [(0, 0, 1), (1, 0, 2), (0, 1, 0), (1, 1, 1)],
              2: [(0, 1, 2)]}
    for d, lst in combos.items():
        for p_in, p_out, ky in lst:
            for kx in range(3):
                for x in range(W):
                    xs = x + kx - 1
                    if 0 <= xs < W:             # clip the band at the edges
                        r = p_in * W * cin + xs * cin
                        c = p_out * W * cmid + x * cmid
                        t1[d, r:r + cin, c:c + cmid] = w1[ky, kx]
    return t1


def _blockdiag_conv1x1_rowpair(w2_io, W):
    """(Cmid, Cout) -> block-diagonal (2*W*Cmid, 2*W*Cout) for the row-pair
    fused-lane layout."""
    return np.kron(np.eye(2 * W, dtype=np.float32),
                   np.asarray(w2_io, dtype=np.float32))


def residual_stack(x_nchw, w1_oihw, w2_oihw, n_res_layers, *,
                   compute_dtype=jnp.bfloat16):
    """ResidualStack forward.  x_nchw: (B, Cin, H, W); torch-shaped conv weights."""
    B, cin, H, W = x_nchw.shape
    cmid = w1_oihw.shape[0]                    # res_h_dim
    cout = w2_oihw.shape[0]                    # h_dim
    assert cout == cin, "residual add requires h_dim == in_dim"
    assert H % 2 == 0, "row-pair lane fusion needs an even H"

    hs = H // 2                                # super-rows per image
    l_in, l_mid, l_out = 2 * W * cin, 2 * W * cmid, 2 * W * cout

    # Host-side layout plumbing (free): NCHW -> row-pair fused-lane rows
    # (B*Hs, 2*W*Cin); image b, super-row R at flat row b*Hs + R.
    x_fused = jnp.transpose(x_nchw, (0, 2, 3, 1)).reshape(B * hs, l_in)

    # Torch conv weights -> banded / block-diagonal matmul weights (numpy on
    # host), cast to bf16 for the MXU (f32 accumulation inside the kernel).
    w1_hwio = np.transpose(np.asarray(w1_oihw), (2, 3, 1, 0))      # (3,3,Cin,Cmid)
    w2_io = np.transpose(np.asarray(w2_oihw)[:, :, 0, 0], (1, 0))  # (Cmid,Cout)
    t1 = jnp.asarray(_banded_conv3x3_rowpair(w1_hwio, W), dtype=compute_dtype)
    t2 = jnp.asarray(_blockdiag_conv1x1_rowpair(w2_io, W), dtype=compute_dtype)

    # Batch block size: stack Bt images into the matmul M dim (target ~128-256
    # rows per step); Bt must divide B.
    bt = max(1, min(B, 256 // max(hs, 1)))
    while B % bt:
        bt -= 1

    r0 = 16                                     # interior sublane offset (bf16-tile aligned)
    hpad = r0 + hs + 8                          # halo rows r0-1 and r0+hs stay zero

    kernel = functools.partial(_residual_stack_kernel,
                               n_layers=n_res_layers, r0=r0)

    flops = int(2 * n_res_layers * B * H * W * (9 * cin * cmid + cmid * cout))
    bytes_accessed = int(B * hs * (l_in + l_out) * 4
                         + 3 * l_in * l_mid * 2 + l_mid * l_out * 2)
    cost = pl.CostEstimate(flops=flops, transcendentals=0,
                           bytes_accessed=bytes_accessed)

    out_fused = pl.pallas_call(
        kernel,
        out_shape=jax.ShapeDtypeStruct((B * hs, l_out), x_nchw.dtype),
        grid_spec=pltpu.PrefetchScalarGridSpec(
            num_scalar_prefetch=0,
            grid=(B // bt,),
            in_specs=[
                pl.BlockSpec((bt * hs, l_in), lambda b: (b, 0)),
                # Constant-index weight blocks.  At realistic weight sizes,
                # single-buffer these (pipeline_mode=pl.Buffered(1)) or DMA
                # them once into a VMEM scratch to halve their VMEM footprint.
                pl.BlockSpec((3, l_in, l_mid), lambda b: (0, 0, 0)),
                pl.BlockSpec((l_mid, l_out), lambda b: (0, 0)),
            ],
            out_specs=pl.BlockSpec((bt * hs, l_out), lambda b: (b, 0)),
            scratch_shapes=[
                pltpu.VMEM((bt, hpad, l_in), compute_dtype),
            ],
        ),
        compiler_params=pltpu.CompilerParams(
            dimension_semantics=("parallel",),
            # Tiny tiles here.  On v5e/v6e (128 MiB physical) raise this toward
            # ~96 MiB once batch/H tiles grow; keep ~48 MiB on v7x (64 MiB/TC).
            vmem_limit_bytes=48 * 1024 * 1024,
        ),
        cost_estimate=cost,
    )(x_fused, t1, t2)

    # (B*Hs, 2*W*Cout) -> NCHW, matching the PyTorch module's layout.
    return jnp.transpose(out_fused.reshape(B, H, W, cout), (0, 3, 1, 2))


def residual_stack_ref(x_nchw, w1_oihw, w2_oihw, n_res_layers):
    """Pure-JAX (XLA conv) reference matching the PyTorch semantics."""
    x = jnp.transpose(x_nchw, (0, 2, 3, 1))                      # NHWC
    w1 = jnp.transpose(w1_oihw, (2, 3, 1, 0))                    # HWIO
    w2 = jnp.transpose(w2_oihw[:, :, 0, 0], (1, 0))[None, None]  # (1,1,Cmid,Cout)
    for _ in range(n_res_layers):
        h = jnp.maximum(x, 0.0)
        h = lax.conv_general_dilated(h, w1, (1, 1), ((1, 1), (1, 1)),
                                     dimension_numbers=("NHWC", "HWIO", "NHWC"))
        h = jnp.maximum(h, 0.0)
        h = lax.conv_general_dilated(h, w2, (1, 1), "VALID",
                                     dimension_numbers=("NHWC", "HWIO", "NHWC"))
        x = x + h
    x = jnp.maximum(x, 0.0)
    return jnp.transpose(x, (0, 3, 1, 2))                        # NCHW


if __name__ == "__main__":
    # ResidualStack(in_dim=4, h_dim=4, res_h_dim=8, n_res_layers=3); x: (2,4,16,16) NCHW.
    B, in_dim, H, W = 2, 4, 16, 16
    h_dim, res_h_dim, n_res_layers = 4, 8, 3   # residual requires h_dim == in_dim

    key = jax.random.PRNGKey(0)
    k_x, k_w1, k_w2 = jax.random.split(key, 3)
    x_nchw = jax.random.normal(k_x, (B, in_dim, H, W), dtype=jnp.float32)
    # torch Conv2d weight shapes: (res_h_dim, in_dim, 3, 3) and (h_dim, res_h_dim, 1, 1)
    w1_oihw = jax.random.normal(k_w1, (res_h_dim, in_dim, 3, 3), dtype=jnp.float32) * 0.1
    w2_oihw = jax.random.normal(k_w2, (h_dim, res_h_dim, 1, 1), dtype=jnp.float32) * 0.1

    out = residual_stack(x_nchw, w1_oihw, w2_oihw, n_res_layers)
    out = jax.block_until_ready(out)

    ref = residual_stack_ref(x_nchw, w1_oihw, w2_oihw, n_res_layers)
    assert out.shape == (B, h_dim, H, W)
    # bf16 MXU operands (f32 accumulation) introduce a few-1e-3 error per layer.
    assert jnp.allclose(out, ref, atol=3e-2, rtol=3e-2), "mismatch vs JAX reference"

    print("KERNEL_OK")
</pallas_src>

<mosaic_0001>
module attributes {stable_mosaic.version = 11 : i64} {
  func.func @_residual_stack_kernel(%arg0: i32, %arg1: memref<16x128xf32, #tpu.memory_space<vmem>>, %arg2: memref<3x128x256xbf16, #tpu.memory_space<vmem>>, %arg3: memref<256x128xbf16, #tpu.memory_space<vmem>>, %arg4: memref<16x128xf32, #tpu.memory_space<vmem>>, %arg5: memref<2x32x128xbf16, #tpu.memory_space<vmem>>) attributes {dimension_semantics = [#tpu.dimension_semantics<parallel>], iteration_bounds = array<i64: 1>, scalar_prefetch = 0 : i64, scratch_operands = 1 : i64, tpu.core_type = #tpu.core_type<tc>, window_params = [{transform_indices = @transform_0, window_bounds = array<i64: 16, 128>}, {pipeline_mode = #tpu.pipeline_mode<synchronous>, transform_indices = @transform_1, window_bounds = array<i64: 3, 128, 256>}, {pipeline_mode = #tpu.pipeline_mode<synchronous>, transform_indices = @transform_2, window_bounds = array<i64: 256, 128>}, {transform_indices = @transform_3, window_bounds = array<i64: 16, 128>}]} {
    %c0_i32 = arith.constant 0 : i32
    %0 = arith.cmpi eq, %arg0, %c0_i32 : i32
    %1 = arith.extui %0 : i1 to i32
    %c0_i32_0 = arith.constant 0 : i32
    %2 = arith.cmpi ne, %1, %c0_i32_0 : i32
    scf.if %2 {
      %cst_90 = arith.constant 0.000000e+00 : bf16
      %97 = vector.broadcast %cst_90 : bf16 to vector<2x32x128xbf16>
      %c0_91 = arith.constant 0 : index
      %c0_92 = arith.constant 0 : index
      %c0_93 = arith.constant 0 : index
      %98 = vector.load %arg5[%c0_91, %c0_92, %c0_93] : memref<2x32x128xbf16, #tpu.memory_space<vmem>>, vector<2x32x128xbf16>
      tpu.vector_store %arg5[%c0_91, %c0_92, %c0_93], %97 {strides = array<i32>} : memref<2x32x128xbf16, #tpu.memory_space<vmem>>, vector<2x32x128xbf16>,
    } else {
    }
    %c0 = arith.constant 0 : index
    %c0_1 = arith.constant 0 : index
    %3 = vector.load %arg1[%c0, %c0_1] : memref<16x128xf32, #tpu.memory_space<vmem>>, vector<16x128xf32>
    %c0_i32_2 = arith.constant 0 : i32
    %cst = arith.constant 0.000000e+00 : f32
    %4 = vector.broadcast %cst : f32 to vector<16x128xf32>
    %5 = arith.maximumf %3, %4 : vector<16x128xf32>
    %6 = vector.shape_cast %5 : vector<16x128xf32> to vector<2x8x128xf32>
    %7 = arith.truncf %6 : vector<2x8x128xf32> to vector<2x8x128xbf16>
    %c0_3 = arith.constant 0 : index
    %c16 = arith.constant 16 : index
    %c0_4 = arith.constant 0 : index
    %8 = vector.load %arg5[%c0_3, %c16, %c0_4] : memref<2x32x128xbf16, #tpu.memory_space<vmem>>, vector<2x8x128xbf16>
    tpu.vector_store %arg5[%c0_3, %c16, %c0_4], %7 {strides = array<i32>} : memref<2x32x128xbf16, #tpu.memory_space<vmem>>, vector<2x8x128xbf16>,
    %cst_5 = arith.constant 0.000000e+00 : f32
    %9 = vector.broadcast %cst_5 : f32 to vector<16x256xf32>
    %c0_6 = arith.constant 0 : index
    %c15 = arith.constant 15 : index
    %c0_7 = arith.constant 0 : index
    %10 = vector.load %arg5[%c0_6, %c15, %c0_7] : memref<2x32x128xbf16, #tpu.memory_space<vmem>>, vector<2x8x128xbf16>
    %11 = vector.shape_cast %10 : vector<2x8x128xbf16> to vector<16x128xbf16>
    %c0_8 = arith.constant 0 : index
    %c0_9 = arith.constant 0 : index
    %c0_10 = arith.constant 0 : index
    %12 = vector.load %arg2[%c0_8, %c0_9, %c0_10] : memref<3x128x256xbf16, #tpu.memory_space<vmem>>, vector<1x128x256xbf16>
    %13 = vector.shape_cast %12 : vector<1x128x256xbf16> to vector<128x256xbf16>
    %cst_11 = arith.constant dense<0.000000e+00> : vector<16x256xf32>
    %14 = tpu.matmul %11, %13, %cst_11 {dimension_numbers = #tpu.dot_dimension_numbers<[1], [0], [0], [1], [0, 0, 1, 1], [], []>} : vector<16x128xbf16>, vector<128x256xbf16>, vector<16x256xf32> -> vector<16x256xf32>
    %15 = arith.addf %9, %14 : vector<16x256xf32>
    %c0_12 = arith.constant 0 : index
    %c16_13 = arith.constant 16 : index
    %c0_14 = arith.constant 0 : index
    %16 = vector.load %arg5[%c0_12, %c16_13, %c0_14] : memref<2x32x128xbf16, #tpu.memory_space<vmem>>, vector<2x8x128xbf16>
    %17 = vector.shape_cast %16 : vector<2x8x128xbf16> to vector<16x128xbf16>
    %c1 = arith.constant 1 : index
    %c0_15 = arith.constant 0 : index
    %c0_16 = arith.constant 0 : index
    %18 = vector.load %arg2[%c1, %c0_15, %c0_16] : memref<3x128x256xbf16, #tpu.memory_space<vmem>>, vector<1x128x256xbf16>
    %19 = vector.shape_cast %18 : vector<1x128x256xbf16> to vector<128x256xbf16>
    %cst_17 = arith.constant dense<0.000000e+00> : vector<16x256xf32>
    %20 = tpu.matmul %17, %19, %cst_17 {dimension_numbers = #tpu.dot_dimension_numbers<[1], [0], [0], [1], [0, 0, 1, 1], [], []>} : vector<16x128xbf16>, vector<128x256xbf16>, vector<16x256xf32> -> vector<16x256xf32>
    %21 = arith.addf %15, %20 : vector<16x256xf32>
    %c0_18 = arith.constant 0 : index
    %c17 = arith.constant 17 : index
    %c0_19 = arith.constant 0 : index
    %22 = vector.load %arg5[%c0_18, %c17, %c0_19] : memref<2x32x128xbf16, #tpu.memory_space<vmem>>, vector<2x8x128xbf16>
    %23 = vector.shape_cast %22 : vector<2x8x128xbf16> to vector<16x128xbf16>
    %c2 = arith.constant 2 : index
    %c0_20 = arith.constant 0 : index
    %c0_21 = arith.constant 0 : index
    %24 = vector.load %arg2[%c2, %c0_20, %c0_21] : memref<3x128x256xbf16, #tpu.memory_space<vmem>>, vector<1x128x256xbf16>
    %25 = vector.shape_cast %24 : vector<1x128x256xbf16> to vector<128x256xbf16>
    %cst_22 = arith.constant dense<0.000000e+00> : vector<16x256xf32>
    %26 = tpu.matmul %23, %25, %cst_22 {dimension_numbers = #tpu.dot_dimension_numbers<[1], [0], [0], [1], [0, 0, 1, 1], [], []>} : vector<16x128xbf16>, vector<128x256xbf16>, vector<16x256xf32> -> vector<16x256xf32>
    %27 = arith.addf %21, %26 : vector<16x256xf32>
    %cst_23 = arith.constant 0.000000e+00 : f32
    %28 = vector.broadcast %cst_23 : f32 to vector<16x256xf32>
    %29 = arith.maximumf %27, %28 : vector<16x256xf32>
    %30 = arith.truncf %29 : vector<16x256xf32> to vector<16x256xbf16>
    %c0_24 = arith.constant 0 : index
    %c0_25 = arith.constant 0 : index
    %31 = vector.load %arg3[%c0_24, %c0_25] : memref<256x128xbf16, #tpu.memory_space<vmem>>, vector<256x128xbf16>
    %cst_26 = arith.constant dense<0.000000e+00> : vector<16x128xf32>
    %32 = tpu.matmul %30, %31, %cst_26 {dimension_numbers = #tpu.dot_dimension_numbers<[1], [0], [0], [1], [0, 0, 1, 1], [], []>} : vector<16x256xbf16>, vector<256x128xbf16>, vector<16x128xf32> -> vector<16x128xf32>
    %33 = arith.addf %3, %32 : vector<16x128xf32>
    %c1_i32 = arith.constant 1 : i32
    %cst_27 = arith.constant 0.000000e+00 : f32
    %34 = vector.broadcast %cst_27 : f32 to vector<16x128xf32>
    %35 = arith.maximumf %33, %34 : vector<16x128xf32>
    %36 = vector.shape_cast %35 : vector<16x128xf32> to vector<2x8x128xf32>
    %37 = arith.truncf %36 : vector<2x8x128xf32> to vector<2x8x128xbf16>
    %c0_28 = arith.constant 0 : index
    %c16_29 = arith.constant 16 : index
    %c0_30 = arith.constant 0 : index
    %38 = vector.load %arg5[%c0_28, %c16_29, %c0_30] : memref<2x32x128xbf16, #tpu.memory_space<vmem>>, vector<2x8x128xbf16>
    tpu.vector_store %arg5[%c0_28, %c16_29, %c0_30], %37 {strides = array<i32>} : memref<2x32x128xbf16, #tpu.memory_space<vmem>>, vector<2x8x128xbf16>,
    %cst_31 = arith.constant 0.000000e+00 : f32
    %39 = vector.broadcast %cst_31 : f32 to vector<16x256xf32>
    %c0_32 = arith.constant 0 : index
    %c15_33 = arith.constant 15 : index
    %c0_34 = arith.constant 0 : index
    %40 = vector.load %arg5[%c0_32, %c15_33, %c0_34] : memref<2x32x128xbf16, #tpu.memory_space<vmem>>, vector<2x8x128xbf16>
    %41 = vector.shape_cast %40 : vector<2x8x128xbf16> to vector<16x128xbf16>
    %c0_35 = arith.constant 0 : index
    %c0_36 = arith.constant 0 : index
    %c0_37 = arith.constant 0 : index
    %42 = vector.load %arg2[%c0_35, %c0_36, %c0_37] : memref<3x128x256xbf16, #tpu.memory_space<vmem>>, vector<1x128x256xbf16>
    %43 = vector.shape_cast %42 : vector<1x128x256xbf16> to vector<128x256xbf16>
    %cst_38 = arith.constant dense<0.000000e+00> : vector<16x256xf32>
    %44 = tpu.matmul %41, %43, %cst_38 {dimension_numbers = #tpu.dot_dimension_numbers<[1], [0], [0], [1], [0, 0, 1, 1], [], []>} : vector<16x128xbf16>, vector<128x256xbf16>, vector<16x256xf32> -> vector<16x256xf32>
    %45 = arith.addf %39, %44 : vector<16x256xf32>
    %c0_39 = arith.constant 0 : index
    %c16_40 = arith.constant 16 : index
    %c0_41 = arith.constant 0 : index
    %46 = vector.load %arg5[%c0_39, %c16_40, %c0_41] : memref<2x32x128xbf16, #tpu.memory_space<vmem>>, vector<2x8x128xbf16>
    %47 = vector.shape_cast %46 : vector<2x8x128xbf16> to vector<16x128xbf16>
    %c1_42 = arith.constant 1 : index
    %c0_43 = arith.constant 0 : index
    %c0_44 = arith.constant 0 : index
    %48 = vector.load %arg2[%c1_42, %c0_43, %c0_44] : memref<3x128x256xbf16, #tpu.memory_space<vmem>>, vector<1x128x256xbf16>
    %49 = vector.shape_cast %48 : vector<1x128x256xbf16> to vector<128x256xbf16>
    %cst_45 = arith.constant dense<0.000000e+00> : vector<16x256xf32>
    %50 = tpu.matmul %47, %49, %cst_45 {dimension_numbers = #tpu.dot_dimension_numbers<[1], [0], [0], [1], [0, 0, 1, 1], [], []>} : vector<16x128xbf16>, vector<128x256xbf16>, vector<16x256xf32> -> vector<16x256xf32>
    %51 = arith.addf %45, %50 : vector<16x256xf32>
    %c0_46 = arith.constant 0 : index
    %c17_47 = arith.constant 17 : index
    %c0_48 = arith.constant 0 : index
    %52 = vector.load %arg5[%c0_46, %c17_47, %c0_48] : memref<2x32x128xbf16, #tpu.memory_space<vmem>>, vector<2x8x128xbf16>
    %53 = vector.shape_cast %52 : vector<2x8x128xbf16> to vector<16x128xbf16>
    %c2_49 = arith.constant 2 : index
    %c0_50 = arith.constant 0 : index
    %c0_51 = arith.constant 0 : index
    %54 = vector.load %arg2[%c2_49, %c0_50, %c0_51] : memref<3x128x256xbf16, #tpu.memory_space<vmem>>, vector<1x128x256xbf16>
    %55 = vector.shape_cast %54 : vector<1x128x256xbf16> to vector<128x256xbf16>
    %cst_52 = arith.constant dense<0.000000e+00> : vector<16x256xf32>
    %56 = tpu.matmul %53, %55, %cst_52 {dimension_numbers = #tpu.dot_dimension_numbers<[1], [0], [0], [1], [0, 0, 1, 1], [], []>} : vector<16x128xbf16>, vector<128x256xbf16>, vector<16x256xf32> -> vector<16x256xf32>
    %57 = arith.addf %51, %56 : vector<16x256xf32>
    %cst_53 = arith.constant 0.000000e+00 : f32
    %58 = vector.broadcast %cst_53 : f32 to vector<16x256xf32>
    %59 = arith.maximumf %57, %58 : vector<16x256xf32>
    %60 = arith.truncf %59 : vector<16x256xf32> to vector<16x256xbf16>
    %c0_54 = arith.constant 0 : index
    %c0_55 = arith.constant 0 : index
    %61 = vector.load %arg3[%c0_54, %c0_55] : memref<256x128xbf16, #tpu.memory_space<vmem>>, vector<256x128xbf16>
    %cst_56 = arith.constant dense<0.000000e+00> : vector<16x128xf32>
    %62 = tpu.matmul %60, %61, %cst_56 {dimension_numbers = #tpu.dot_dimension_numbers<[1], [0], [0], [1], [0, 0, 1, 1], [], []>} : vector<16x256xbf16>, vector<256x128xbf16>, vector<16x128xf32> -> vector<16x128xf32>
    %63 = arith.addf %33, %62 : vector<16x128xf32>
    %c2_i32 = arith.constant 2 : i32
    %cst_57 = arith.constant 0.000000e+00 : f32
    %64 = vector.broadcast %cst_57 : f32 to vector<16x128xf32>
    %65 = arith.maximumf %63, %64 : vector<16x128xf32>
    %66 = vector.shape_cast %65 : vector<16x128xf32> to vector<2x8x128xf32>
    %67 = arith.truncf %66 : vector<2x8x128xf32> to vector<2x8x128xbf16>
    %c0_58 = arith.constant 0 : index
    %c16_59 = arith.constant 16 : index
    %c0_60 = arith.constant 0 : index
    %68 = vector.load %arg5[%c0_58, %c16_59, %c0_60] : memref<2x32x128xbf16, #tpu.memory_space<vmem>>, vector<2x8x128xbf16>
    tpu.vector_store %arg5[%c0_58, %c16_59, %c0_60], %67 {strides = array<i32>} : memref<2x32x128xbf16, #tpu.memory_space<vmem>>, vector<2x8x128xbf16>,
    %cst_61 = arith.constant 0.000000e+00 : f32
    %69 = vector.broadcast %cst_61 : f32 to vector<16x256xf32>
    %c0_62 = arith.constant 0 : index
    %c15_63 = arith.constant 15 : index
    %c0_64 = arith.constant 0 : index
    %70 = vector.load %arg5[%c0_62, %c15_63, %c0_64] : memref<2x32x128xbf16, #tpu.memory_space<vmem>>, vector<2x8x128xbf16>
    %71 = vector.shape_cast %70 : vector<2x8x128xbf16> to vector<16x128xbf16>
    %c0_65 = arith.constant 0 : index
    %c0_66 = arith.constant 0 : index
    %c0_67 = arith.constant 0 : index
    %72 = vector.load %arg2[%c0_65, %c0_66, %c0_67] : memref<3x128x256xbf16, #tpu.memory_space<vmem>>, vector<1x128x256xbf16>
    %73 = vector.shape_cast %72 : vector<1x128x256xbf16> to vector<128x256xbf16>
    %cst_68 = arith.constant dense<0.000000e+00> : vector<16x256xf32>
    %74 = tpu.matmul %71, %73, %cst_68 {dimension_numbers = #tpu.dot_dimension_numbers<[1], [0], [0], [1], [0, 0, 1, 1], [], []>} : vector<16x128xbf16>, vector<128x256xbf16>, vector<16x256xf32> -> vector<16x256xf32>
    %75 = arith.addf %69, %74 : vector<16x256xf32>
    %c0_69 = arith.constant 0 : index
    %c16_70 = arith.constant 16 : index
    %c0_71 = arith.constant 0 : index
    %76 = vector.load %arg5[%c0_69, %c16_70, %c0_71] : memref<2x32x128xbf16, #tpu.memory_space<vmem>>, vector<2x8x128xbf16>
    %77 = vector.shape_cast %76 : vector<2x8x128xbf16> to vector<16x128xbf16>
    %c1_72 = arith.constant 1 : index
    %c0_73 = arith.constant 0 : index
    %c0_74 = arith.constant 0 : index
    %78 = vector.load %arg2[%c1_72, %c0_73, %c0_74] : memref<3x128x256xbf16, #tpu.memory_space<vmem>>, vector<1x128x256xbf16>
    %79 = vector.shape_cast %78 : vector<1x128x256xbf16> to vector<128x256xbf16>
    %cst_75 = arith.constant dense<0.000000e+00> : vector<16x256xf32>
    %80 = tpu.matmul %77, %79, %cst_75 {dimension_numbers = #tpu.dot_dimension_numbers<[1], [0], [0], [1], [0, 0, 1, 1], [], []>} : vector<16x128xbf16>, vector<128x256xbf16>, vector<16x256xf32> -> vector<16x256xf32>
    %81 = arith.addf %75, %80 : vector<16x256xf32>
    %c0_76 = arith.constant 0 : index
    %c17_77 = arith.constant 17 : index
    %c0_78 = arith.constant 0 : index
    %82 = vector.load %arg5[%c0_76, %c17_77, %c0_78] : memref<2x32x128xbf16, #tpu.memory_space<vmem>>, vector<2x8x128xbf16>
    %83 = vector.shape_cast %82 : vector<2x8x128xbf16> to vector<16x128xbf16>
    %c2_79 = arith.constant 2 : index
    %c0_80 = arith.constant 0 : index
    %c0_81 = arith.constant 0 : index
    %84 = vector.load %arg2[%c2_79, %c0_80, %c0_81] : memref<3x128x256xbf16, #tpu.memory_space<vmem>>, vector<1x128x256xbf16>
    %85 = vector.shape_cast %84 : vector<1x128x256xbf16> to vector<128x256xbf16>
    %cst_82 = arith.constant dense<0.000000e+00> : vector<16x256xf32>
    %86 = tpu.matmul %83, %85, %cst_82 {dimension_numbers = #tpu.dot_dimension_numbers<[1], [0], [0], [1], [0, 0, 1, 1], [], []>} : vector<16x128xbf16>, vector<128x256xbf16>, vector<16x256xf32> -> vector<16x256xf32>
    %87 = arith.addf %81, %86 : vector<16x256xf32>
    %cst_83 = arith.constant 0.000000e+00 : f32
    %88 = vector.broadcast %cst_83 : f32 to vector<16x256xf32>
    %89 = arith.maximumf %87, %88 : vector<16x256xf32>
    %90 = arith.truncf %89 : vector<16x256xf32> to vector<16x256xbf16>
    %c0_84 = arith.constant 0 : index
    %c0_85 = arith.constant 0 : index
    %91 = vector.load %arg3[%c0_84, %c0_85] : memref<256x128xbf16, #tpu.memory_space<vmem>>, vector<256x128xbf16>
    %cst_86 = arith.constant dense<0.000000e+00> : vector<16x128xf32>
    %92 = tpu.matmul %90, %91, %cst_86 {dimension_numbers = #tpu.dot_dimension_numbers<[1], [0], [0], [1], [0, 0, 1, 1], [], []>} : vector<16x256xbf16>, vector<256x128xbf16>, vector<16x128xf32> -> vector<16x128xf32>
    %93 = arith.addf %63, %92 : vector<16x128xf32>
    %cst_87 = arith.constant 0.000000e+00 : f32
    %94 = vector.broadcast %cst_87 : f32 to vector<16x128xf32>
    %95 = arith.maximumf %93, %94 : vector<16x128xf32>
    %c0_88 = arith.constant 0 : index
    %c0_89 = arith.constant 0 : index
    %96 = vector.load %arg4[%c0_88, %c0_89] : memref<16x128xf32, #tpu.memory_space<vmem>>, vector<16x128xf32>
    tpu.vector_store %arg4[%c0_88, %c0_89], %95 {strides = array<i32>} : memref<16x128xf32, #tpu.memory_space<vmem>>, vector<16x128xf32>,
    return
  }
  func.func @transform_0(%arg0: i32) -> (i32, i32) {
    %c0_i32 = arith.constant 0 : i32
    %c0_i32_0 = arith.constant 0 : i32
    return %arg0, %c0_i32 : i32, i32
  }
  func.func @transform_1(%arg0: i32) -> (i32, i32, i32) {
    %c0_i32 = arith.constant 0 : i32
    %c0_i32_0 = arith.constant 0 : i32
    %c0_i32_1 = arith.constant 0 : i32
    %c0_i32_2 = arith.constant 0 : i32
    return %c0_i32, %c0_i32_0, %c0_i32_1 : i32, i32, i32
  }
  func.func @transform_2(%arg0: i32) -> (i32, i32) {
    %c0_i32 = arith.constant 0 : i32
    %c0_i32_0 = arith.constant 0 : i32
    %c0_i32_1 = arith.constant 0 : i32
    return %c0_i32, %c0_i32_0 : i32, i32
  }
  func.func @transform_3(%arg0: i32) -> (i32, i32) {
    %c0_i32 = arith.constant 0 : i32
    %c0_i32_0 = arith.constant 0 : i32
    return %arg0, %c0_i32 : i32, i32
  }
}

</mosaic_0001>

<llo_original>
// kernel: tpu_custom_call.1
$region0: #{tpu_custom_call.1}
  #allocation0 [shape = 'u32[]', space=smem, size = 0x4, offset = 0x4, fixed_abs, tag = 'smem constant byte address 0x4 - core index']
  #allocation1 [shape = 'u32[72,128]{1,0:T(1,128)}', space=vmem, size = 0x9000, scoped, tag = 'internal scratch']
  #allocation2 [shape = 'bf16[2,32,128]{2,1,0:T(8,128)(2,1)}', space=vmem, size = 0x4000, scoped, tag = 'scratch operand']
  %s0 = inlined_call_operand.hbm [shape: f32[16,128], index: 0, kind: input, shape index: {}]
  %s1 = inlined_call_operand.hbm [shape: bf16[3,128,256], index: 1, kind: input, shape index: {}]
  %s2 = inlined_call_operand.hbm [shape: bf16[256,128], index: 2, kind: input, shape index: {}]
  %s3 = inlined_call_operand.hbm [shape: f32[16,128], index: 3, kind: output, shape index: {}]
  %s4 = sld [smem:[#allocation0]]
  $region38: #{tpu_custom_call.1} parent=0
    _
  %s6 = ssub.s32 1, %s4
  %s7 = scalar_select 0, %s6, %s4
  $region1: #{tpu_custom_call.1} parent=0
    #allocation3 [shape = 'u8[8192]{0}', space=vmem, size = 0x2000, scoped, tag = 'input window, operand 0, single buffered']
    #allocation4 [shape = 's32[1]{0}', space=sflag, size = 0x4, scoped, tag = 'scoped memory for tpu_custom_call.1']
    #allocation5 [shape = 's32[1]{0}', space=sflag, size = 0x4, scoped, tag = 'scoped memory for tpu_custom_call.1']
    #allocation6 [shape = 'u8[196608]{0}', space=vmem, size = 0x30000, scoped, tag = 'input window, operand 1, single buffered']
    #allocation7 [shape = 's32[1]{0}', space=sflag, size = 0x4, scoped, tag = 'scoped memory for tpu_custom_call.1']
    #allocation8 [shape = 'u8[65536]{0}', space=vmem, size = 0x10000, scoped, tag = 'input window, operand 2, single buffered']
    #allocation9 [shape = 'u8[8192]{0}', space=vmem, size = 0x2000, scoped, tag = 'output window, operand 0, single buffered']
    %8 = vsyncpa [#allocation4], 0
    %9 = vsyncpa [#allocation7], 0
    %10 = vsyncpa [#allocation5], 0
    // Predicated region
    $region2: #{tpu_custom_call.1} parent=1 // pred_check
      _
    $region3: #{tpu_custom_call.1} parent=1 // pred_check_branch
      %12 = sbr.rel (0) target = $region5
    $region4: #{tpu_custom_call.1} parent=1 // pred_region
      %14 = vsyncadd [#allocation4], 0
      %s15 = sshll.u32 %s0, 4
      %s16 = int_to_ptr.hbm [resolvable:$true] %s15
      %s17 = sshll.u32 [#allocation3], 4
      %s18 = int_to_ptr.vmem [resolvable:$true] %s17
      %23 = dma.hbm_to_vmem [thread:$0]  %s16, 256, %s18, [#allocation4], 128, 128, 8
    $region5: #{tpu_custom_call.1} parent=1 // pred_fallthru
      _
    // Predicated region
    $region6: #{tpu_custom_call.1} parent=1 // pred_check
      _
    $region7: #{tpu_custom_call.1} parent=1 // pred_check_branch
      %25 = sbr.rel (0) target = $region9
    $region8: #{tpu_custom_call.1} parent=1 // pred_region
      %27 = vsyncadd [#allocation7], 0
      %s28 = sshll.u32 %s1, 4
      %s29 = int_to_ptr.hbm [resolvable:$true] %s28
      %s30 = sshll.u32 [#allocation6], 4
      %s31 = int_to_ptr.vmem [resolvable:$true] %s30
      %36 = dma.hbm_to_vmem [thread:$0]  %s29, 6144, %s31, [#allocation7], 128, 128, 8
    $region9: #{tpu_custom_call.1} parent=1 // pred_fallthru
      _
    // Predicated region
    $region10: #{tpu_custom_call.1} parent=1 // pred_check
      _
    $region11: #{tpu_custom_call.1} parent=1 // pred_check_branch
      %38 = sbr.rel (0) target = $region13
    $region12: #{tpu_custom_call.1} parent=1 // pred_region
      %40 = vsyncadd [#allocation7], 0
      %s41 = sshll.u32 %s2, 4
      %s42 = int_to_ptr.hbm [resolvable:$true] %s41
      %s43 = sshll.u32 [#allocation8], 4
      %s44 = int_to_ptr.vmem [resolvable:$true] %s43
      %49 = dma.hbm_to_vmem [thread:$0]  %s42, 2048, %s44, [#allocation7], 64, 64, 4
    $region13: #{tpu_custom_call.1} parent=1 // pred_fallthru
      _
    // Predicated region
    $region14: #{tpu_custom_call.1} parent=1 // pred_check
      _
    $region15: #{tpu_custom_call.1} parent=1 // pred_check_branch
      %51 = sbr.rel (0) target = $region17
    $region16: #{tpu_custom_call.1} parent=1 // pred_region
      %53 = dma.done [#allocation4], 256
    $region17: #{tpu_custom_call.1} parent=1 // pred_fallthru
      _
    // Predicated region
    $region18: #{tpu_custom_call.1} parent=1 // pred_check
      _
    $region19: #{tpu_custom_call.1} parent=1 // pred_check_branch
      %55 = sbr.rel (0) target = $region21
    $region20: #{tpu_custom_call.1} parent=1 // pred_region
      %57 = dma.done [#allocation7], 6144
    $region21: #{tpu_custom_call.1} parent=1 // pred_fallthru
      _
    // Predicated region
    $region22: #{tpu_custom_call.1} parent=1 // pred_check
      _
    $region23: #{tpu_custom_call.1} parent=1 // pred_check_branch
      %59 = sbr.rel (0) target = $region25
    $region24: #{tpu_custom_call.1} parent=1 // pred_region
      %61 = dma.done [#allocation7], 2048
    $region25: #{tpu_custom_call.1} parent=1 // pred_fallthru
      _
    %p63 = scmp.eq.s32.totalorder 0, 0
    // Predicated region
    $region26: #{tpu_custom_call.1} parent=1 // pred_check
      %p64 = pneg %p63
    $region27: #{tpu_custom_call.1} parent=1 // pred_check_branch
      %66 = sbr.rel (%p64) target = $region29
    $region28: #{tpu_custom_call.1} parent=1 // pred_region
      %67 = vst [vmem:[#allocation2] sm:$0xf] 0
      %68 = vst [vmem:[#allocation2 + $0x4] sm:$0xf] 0
      %69 = vst [vmem:[#allocation2 + $0x8] sm:$0xf] 0
      %70 = vst [vmem:[#allocation2 + $0xc] sm:$0xf] 0
      %71 = vst [vmem:[#allocation2 + $0x10] sm:$0xf] 0
      %72 = vst [vmem:[#allocation2 + $0x14] sm:$0xf] 0
      %73 = vst [vmem:[#allocation2 + $0x18] sm:$0xf] 0
      %74 = vst [vmem:[#allocation2 + $0x1c] sm:$0xf] 0
    $region29: #{tpu_custom_call.1} parent=1 // pred_fallthru
      _
    %v75 = vld [vmem:[#allocation3] sm:$0xff]
    %v76 = vld [vmem:[#allocation3 + $0x8] sm:$0xff]
    %v77 = vmax.f32 %v75, 0.0
    %v78 = vmax.f32 %v76, 0.0
    %v79 = vpack.c.bf16 %v77, %v77
    %v80 = vpack.c.bf16 %v78, %v78
    %81 = vst [vmem:[#allocation2 + $0x8] sm:$0xf] %v79
    %82 = vst [vmem:[#allocation2 + $0x18] sm:$0xf] %v80
    %v83 = vld [vmem:[#allocation2 + $0x4] sm:$0x8]
    %v84 = vld [vmem:[#allocation2 + $0x8] sm:$0xf]
    %v85 = vld [vmem:[#allocation2 + $0x14] sm:$0x8]
    %v86 = vld [vmem:[#allocation2 + $0x18] sm:$0xf]
    %vm87 = vsmask.f32 256
    %vm88 = vsmask.f32 4368
    %vm89 = vmor %vm87, %vm88
    %v91 = vshrl.u32 %v83, 16
    %v93 = vrot.slane %v91, 7
    %v94 = vrot.slane %v93, 4
    %v96 = vshrl.u32 %v84, 16
    %v98 = vrot.slane %v96, 7
    %v99 = vshll.u32 %v84, 16
    %v101 = vor.u32 %v98, %v99
    %v102 = vsel %vm89, %v94, %v101
    %v104 = vshrl.u32 %v85, 16
    %v106 = vrot.slane %v104, 7
    %v107 = vrot.slane %v106, 4
    %v109 = vshrl.u32 %v86, 16
    %v111 = vrot.slane %v109, 7
    %v112 = vshll.u32 %v86, 16
    %v114 = vor.u32 %v111, %v112
    %v115 = vsel %vm89, %v107, %v114
    %v116 = vld [vmem:[#allocation6] sm:$0xff]
    %v117 = vld [vmem:[#allocation6 + $0x8] sm:$0xff]
    %v118 = vld [vmem:[#allocation6 + $0x10] sm:$0xff]
    %v119 = vld [vmem:[#allocation6 + $0x18] sm:$0xff]
    %v120 = vld [vmem:[#allocation6 + $0x20] sm:$0xff]
    %v121 = vld [vmem:[#allocation6 + $0x28] sm:$0xff]
    %v122 = vld [vmem:[#allocation6 + $0x30] sm:$0xff]
    %v123 = vld [vmem:[#allocation6 + $0x38] sm:$0xff]
    %v124 = vld [vmem:[#allocation6 + $0x40] sm:$0xff]
    %v125 = vld [vmem:[#allocation6 + $0x48] sm:$0xff]
    %v126 = vld [vmem:[#allocation6 + $0x50] sm:$0xff]
    %v127 = vld [vmem:[#allocation6 + $0x58] sm:$0xff]
    %v128 = vld [vmem:[#allocation6 + $0x60] sm:$0xff]
    %v129 = vld [vmem:[#allocation6 + $0x68] sm:$0xff]
    %v130 = vld [vmem:[#allocation6 + $0x70] sm:$0xff]
    %v131 = vld [vmem:[#allocation6 + $0x78] sm:$0xff]
    %s132 = scalar_lea.vmem [#allocation6], 128
    %v133 = vld [vmem:[%s132] sm:$0xff]
    %v134 = vld [vmem:[%s132 + $0x8] sm:$0xff]
    %v135 = vld [vmem:[%s132 + $0x10] sm:$0xff]
    %v136 = vld [vmem:[%s132 + $0x18] sm:$0xff]
    %v137 = vld [vmem:[%s132 + $0x20] sm:$0xff]
    %v138 = vld [vmem:[%s132 + $0x28] sm:$0xff]
    %v139 = vld [vmem:[%s132 + $0x30] sm:$0xff]
    %v140 = vld [vmem:[%s132 + $0x38] sm:$0xff]
    %v141 = vld [vmem:[%s132 + $0x40] sm:$0xff]
    %v142 = vld [vmem:[%s132 + $0x48] sm:$0xff]
    %v143 = vld [vmem:[%s132 + $0x50] sm:$0xff]
    %v144 = vld [vmem:[%s132 + $0x58] sm:$0xff]
    %v145 = vld [vmem:[%s132 + $0x60] sm:$0xff]
    %v146 = vld [vmem:[%s132 + $0x68] sm:$0xff]
    %v147 = vld [vmem:[%s132 + $0x70] sm:$0xff]
    %v148 = vld [vmem:[%s132 + $0x78] sm:$0xff]
    %v151 = vunpack.c.l.b16 %v84
    %v152 = vunpack.c.l.b16 %v86
    %v153 = vpack.c.b16 %v152, %v151
    %v171 = vunpack.c.l.b16 %v133
    %v172 = vunpack.c.h.b16 %v133
    %v173 = vunpack.c.l.b16 %v134
    %v174 = vunpack.c.h.b16 %v134
    %v175 = vunpack.c.l.b16 %v135
    %v176 = vunpack.c.h.b16 %v135
    %v177 = vunpack.c.l.b16 %v136
    %v178 = vunpack.c.h.b16 %v136
    %v179 = vunpack.c.l.b16 %v137
    %v180 = vunpack.c.h.b16 %v137
    %v181 = vunpack.c.l.b16 %v138
    %v182 = vunpack.c.h.b16 %v138
    %v183 = vunpack.c.l.b16 %v139
    %v184 = vunpack.c.h.b16 %v139
    %v185 = vunpack.c.l.b16 %v140
    %v186 = vunpack.c.h.b16 %v140
    %v187 = vunpack.c.l.b16 %v141
    %v188 = vunpack.c.h.b16 %v141
    %v189 = vunpack.c.l.b16 %v142
    %v190 = vunpack.c.h.b16 %v142
    %v191 = vunpack.c.l.b16 %v143
    %v192 = vunpack.c.h.b16 %v143
    %v193 = vunpack.c.l.b16 %v144
    %v194 = vunpack.c.h.b16 %v144
    %v195 = vunpack.c.l.b16 %v145
    %v196 = vunpack.c.h.b16 %v145
    %v197 = vunpack.c.l.b16 %v146
    %v198 = vunpack.c.h.b16 %v146
    %v199 = vunpack.c.l.b16 %v147
    %v200 = vunpack.c.h.b16 %v147
    %v201 = vunpack.c.l.b16 %v148
    %v202 = vunpack.c.h.b16 %v148
    %v203 = vpack.c.b16 %v173, %v171
    %v204 = vpack.c.b16 %v174, %v172
    %v205 = vpack.c.b16 %v177, %v175
    %v206 = vpack.c.b16 %v178, %v176
    %v207 = vpack.c.b16 %v181, %v179
    %v208 = vpack.c.b16 %v182, %v180
    %v209 = vpack.c.b16 %v185, %v183
    %v210 = vpack.c.b16 %v186, %v184
    %v211 = vpack.c.b16 %v189, %v187
    %v212 = vpack.c.b16 %v190, %v188
    %v213 = vpack.c.b16 %v193, %v191
    %v214 = vpack.c.b16 %v194, %v192
    %v215 = vpack.c.b16 %v197, %v195
    %v216 = vpack.c.b16 %v198, %v196
    %v217 = vpack.c.b16 %v201, %v199
    %v218 = vpack.c.b16 %v202, %v200
    %235 = vmatpush.bf16.msra.mxu0 %v217
    %236 = vmatpush.bf16.msra.mxu0 %v215
    %237 = vmatpush.bf16.msra.mxu0 %v213
    %238 = vmatpush.bf16.msra.mxu0 %v211
    %239 = vmatpush.bf16.msra.mxu0 %v209
    %240 = vmatpush.bf16.msra.mxu0 %v207
    %241 = vmatpush.bf16.msra.mxu0 %v205
    %242 = vmatpush.bf16.msra.mxu0 %v203
    %243 = vmatmul.bf16.gmra.mxu0 %v153
    %v244 = vpop.f32.mrf.mxu0
    %v245 = vadd.f32 0.0, %v244
    %v246 = vpop.f32.mrf.mxu0
    %v247 = vadd.f32 0.0, %v246
    %248 = vdwg.mxu0
    %249 = vmatpush.bf16.msra.mxu0 %v218
    %250 = vmatpush.bf16.msra.mxu0 %v216
    %251 = vmatpush.bf16.msra.mxu0 %v214
    %252 = vmatpush.bf16.msra.mxu0 %v212
    %253 = vmatpush.bf16.msra.mxu0 %v210
    %254 = vmatpush.bf16.msra.mxu0 %v208
    %255 = vmatpush.bf16.msra.mxu0 %v206
    %256 = vmatpush.bf16.msra.mxu0 %v204
    %257 = vmatmul.bf16.gmra.mxu0 %v153
    %v258 = vpop.f32.mrf.mxu0
    %v259 = vadd.f32 0.0, %v258
    %v260 = vpop.f32.mrf.mxu0
    %v261 = vadd.f32 0.0, %v260
    %262 = vdwg.mxu0
    %v263 = vunpack.c.l.b16 %v102
    %v264 = vunpack.c.l.b16 %v115
    %v265 = vpack.c.b16 %v264, %v263
    %v283 = vunpack.c.l.b16 %v116
    %v284 = vunpack.c.h.b16 %v116
    %v285 = vunpack.c.l.b16 %v117
    %v286 = vunpack.c.h.b16 %v117
    %v287 = vunpack.c.l.b16 %v118
    %v288 = vunpack.c.h.b16 %v118
    %v289 = vunpack.c.l.b16 %v119
    %v290 = vunpack.c.h.b16 %v119
    %v291 = vunpack.c.l.b16 %v120
    %v292 = vunpack.c.h.b16 %v120
    %v293 = vunpack.c.l.b16 %v121
    %v294 = vunpack.c.h.b16 %v121
    %v295 = vunpack.c.l.b16 %v122
    %v296 = vunpack.c.h.b16 %v122
    %v297 = vunpack.c.l.b16 %v123
    %v298 = vunpack.c.h.b16 %v123
    %v299 = vunpack.c.l.b16 %v124
    %v300 = vunpack.c.h.b16 %v124
    %v301 = vunpack.c.l.b16 %v125
    %v302 = vunpack.c.h.b16 %v125
    %v303 = vunpack.c.l.b16 %v126
    %v304 = vunpack.c.h.b16 %v126
    %v305 = vunpack.c.l.b16 %v127
    %v306 = vunpack.c.h.b16 %v127
    %v307 = vunpack.c.l.b16 %v128
    %v308 = vunpack.c.h.b16 %v128
    %v309 = vunpack.c.l.b16 %v129
    %v310 = vunpack.c.h.b16 %v129
    %v311 = vunpack.c.l.b16 %v130
    %v312 = vunpack.c.h.b16 %v130
    %v313 = vunpack.c.l.b16 %v131
    %v314 = vunpack.c.h.b16 %v131
    %v315 = vpack.c.b16 %v285, %v283
    %v316 = vpack.c.b16 %v286, %v284
    %v317 = vpack.c.b16 %v289, %v287
    %v318 = vpack.c.b16 %v290, %v288
    %v319 = vpack.c.b16 %v293, %v291
    %v320 = vpack.c.b16 %v294, %v292
    %v321 = vpack.c.b16 %v297, %v295
    %v322 = vpack.c.b16 %v298, %v296
    %v323 = vpack.c.b16 %v301, %v299
    %v324 = vpack.c.b16 %v302, %v300
    %v325 = vpack.c.b16 %v305, %v303
    %v326 = vpack.c.b16 %v306, %v304
    %v327 = vpack.c.b16 %v309, %v307
    %v328 = vpack.c.b16 %v310, %v308
    %v329 = vpack.c.b16 %v313, %v311
    %v330 = vpack.c.b16 %v314, %v312
    %347 = vmatpush.bf16.msra.mxu0 %v329
    %348 = vmatpush.bf16.msra.mxu0 %v327
    %349 = vmatpush.bf16.msra.mxu0 %v325
    %350 = vmatpush.bf16.msra.mxu0 %v323
    %351 = vmatpush.bf16.msra.mxu0 %v321
    %352 = vmatpush.bf16.msra.mxu0 %v319
    %353 = vmatpush.bf16.msra.mxu0 %v317
    %354 = vmatpush.bf16.msra.mxu0 %v315
    %355 = vmatmul.bf16.gmra.mxu0 %v265
    %v356 = vpop.f32.mrf.mxu0
    %v357 = vadd.f32 %v245, %v356
    %v358 = vpop.f32.mrf.mxu0
    %v359 = vadd.f32 %v247, %v358
    %360 = vdwg.mxu0
    %361 = vmatpush.bf16.msra.mxu0 %v330
    %362 = vmatpush.bf16.msra.mxu0 %v328
    %363 = vmatpush.bf16.msra.mxu0 %v326
    %364 = vmatpush.bf16.msra.mxu0 %v324
    %365 = vmatpush.bf16.msra.mxu0 %v322
    %366 = vmatpush.bf16.msra.mxu0 %v320
    %367 = vmatpush.bf16.msra.mxu0 %v318
    %368 = vmatpush.bf16.msra.mxu0 %v316
    %369 = vmatmul.bf16.gmra.mxu0 %v265
    %v370 = vpop.f32.mrf.mxu0
    %v371 = vadd.f32 %v259, %v370
    %v372 = vpop.f32.mrf.mxu0
    %v373 = vadd.f32 %v261, %v372
    %374 = vdwg.mxu0
    %v375 = vld [vmem:[#allocation2 + $0x8] sm:$0xf]
    %v376 = vld [vmem:[#allocation2 + $0xc] sm:$0x1]
    %v377 = vld [vmem:[#allocation2 + $0x18] sm:$0xf]
    %v378 = vld [vmem:[#allocation2 + $0x1c] sm:$0x1]
    %vm379 = vsmask.f32 3328
    %vm380 = vsmask.f32 7440
    %vm381 = vmor %vm379, %vm380
    %v383 = vshrl.u32 %v375, 16
    %v385 = vrot.slane %v383, 4
    %v386 = vshll.u32 %v375, 16
    %v388 = vrot.slane %v386, 5
    %v389 = vor.u32 %v385, %v388
    %v390 = vrot.slane %v389, 4
    %v392 = vshll.u32 %v376, 16
    %v394 = vrot.slane %v392, 5
    %v395 = vsel %vm381, %v390, %v394
    %v397 = vshrl.u32 %v377, 16
    %v399 = vrot.slane %v397, 4
    %v400 = vshll.u32 %v377, 16
    %v402 = vrot.slane %v400, 5
    %v403 = vor.u32 %v399, %v402
    %v404 = vrot.slane %v403, 4
    %v406 = vshll.u32 %v378, 16
    %v408 = vrot.slane %v406, 5
    %v409 = vsel %vm381, %v404, %v408
    %s410 = scalar_lea.vmem [#allocation6], 256
    %v411 = vld [vmem:[%s410] sm:$0xff]
    %v412 = vld [vmem:[%s410 + $0x8] sm:$0xff]
    %v413 = vld [vmem:[%s410 + $0x10] sm:$0xff]
    %v414 = vld [vmem:[%s410 + $0x18] sm:$0xff]
    %v415 = vld [vmem:[%s410 + $0x20] sm:$0xff]
    %v416 = vld [vmem:[%s410 + $0x28] sm:$0xff]
    %v417 = vld [vmem:[%s410 + $0x30] sm:$0xff]
    %v418 = vld [vmem:[%s410 + $0x38] sm:$0xff]
    %v419 = vld [vmem:[%s410 + $0x40] sm:$0xff]
    %v420 = vld [vmem:[%s410 + $0x48] sm:$0xff]
    %v421 = vld [vmem:[%s410 + $0x50] sm:$0xff]
    %v422 = vld [vmem:[%s410 + $0x58] sm:$0xff]
    %v423 = vld [vmem:[%s410 + $0x60] sm:$0xff]
    %v424 = vld [vmem:[%s410 + $0x68] sm:$0xff]
    %v425 = vld [vmem:[%s410 + $0x70] sm:$0xff]
    %v426 = vld [vmem:[%s410 + $0x78] sm:$0xff]
    %v427 = vunpack.c.l.b16 %v395
    %v428 = vunpack.c.l.b16 %v409
    %v429 = vpack.c.b16 %v428, %v427
    %v447 = vunpack.c.l.b16 %v411
    %v448 = vunpack.c.h.b16 %v411
    %v449 = vunpack.c.l.b16 %v412
    %v450 = vunpack.c.h.b16 %v412
    %v451 = vunpack.c.l.b16 %v413
    %v452 = vunpack.c.h.b16 %v413
    %v453 = vunpack.c.l.b16 %v414
    %v454 = vunpack.c.h.b16 %v414
    %v455 = vunpack.c.l.b16 %v415
    %v456 = vunpack.c.h.b16 %v415
    %v457 = vunpack.c.l.b16 %v416
    %v458 = vunpack.c.h.b16 %v416
    %v459 = vunpack.c.l.b16 %v417
    %v460 = vunpack.c.h.b16 %v417
    %v461 = vunpack.c.l.b16 %v418
    %v462 = vunpack.c.h.b16 %v418
    %v463 = vunpack.c.l.b16 %v419
    %v464 = vunpack.c.h.b16 %v419
    %v465 = vunpack.c.l.b16 %v420
    %v466 = vunpack.c.h.b16 %v420
    %v467 = vunpack.c.l.b16 %v421
    %v468 = vunpack.c.h.b16 %v421
    %v469 = vunpack.c.l.b16 %v422
    %v470 = vunpack.c.h.b16 %v422
    %v471 = vunpack.c.l.b16 %v423
    %v472 = vunpack.c.h.b16 %v423
    %v473 = vunpack.c.l.b16 %v424
    %v474 = vunpack.c.h.b16 %v424
    %v475 = vunpack.c.l.b16 %v425
    %v476 = vunpack.c.h.b16 %v425
    %v477 = vunpack.c.l.b16 %v426
    %v478 = vunpack.c.h.b16 %v426
    %v479 = vpack.c.b16 %v449, %v447
    %v480 = vpack.c.b16 %v450, %v448
    %v481 = vpack.c.b16 %v453, %v451
    %v482 = vpack.c.b16 %v454, %v452
    %v483 = vpack.c.b16 %v457, %v455
    %v484 = vpack.c.b16 %v458, %v456
    %v485 = vpack.c.b16 %v461, %v459
    %v486 = vpack.c.b16 %v462, %v460
    %v487 = vpack.c.b16 %v465, %v463
    %v488 = vpack.c.b16 %v466, %v464
    %v489 = vpack.c.b16 %v469, %v467
    %v490 = vpack.c.b16 %v470, %v468
    %v491 = vpack.c.b16 %v473, %v471
    %v492 = vpack.c.b16 %v474, %v472
    %v493 = vpack.c.b16 %v477, %v475
    %v494 = vpack.c.b16 %v478, %v476
    %511 = vmatpush.bf16.msra.mxu0 %v493
    %512 = vmatpush.bf16.msra.mxu0 %v491
    %513 = vmatpush.bf16.msra.mxu0 %v489
    %514 = vmatpush.bf16.msra.mxu0 %v487
    %515 = vmatpush.bf16.msra.mxu0 %v485
    %516 = vmatpush.bf16.msra.mxu0 %v483
    %517 = vmatpush.bf16.msra.mxu0 %v481
    %518 = vmatpush.bf16.msra.mxu0 %v479
    %519 = vmatmul.bf16.gmra.mxu0 %v429
    %v520 = vpop.f32.mrf.mxu0
    %v521 = vadd.f32 0.0, %v520
    %v522 = vpop.f32.mrf.mxu0
    %v523 = vadd.f32 0.0, %v522
    %524 = vdwg.mxu0
    %525 = vmatpush.bf16.msra.mxu0 %v494
    %526 = vmatpush.bf16.msra.mxu0 %v492
    %527 = vmatpush.bf16.msra.mxu0 %v490
    %528 = vmatpush.bf16.msra.mxu0 %v488
    %529 = vmatpush.bf16.msra.mxu0 %v486
    %530 = vmatpush.bf16.msra.mxu0 %v484
    %531 = vmatpush.bf16.msra.mxu0 %v482
    %532 = vmatpush.bf16.msra.mxu0 %v480
    %533 = vmatmul.bf16.gmra.mxu0 %v429
    %v534 = vpop.f32.mrf.mxu0
    %v535 = vadd.f32 0.0, %v534
    %v536 = vpop.f32.mrf.mxu0
    %v537 = vadd.f32 0.0, %v536
    %538 = vdwg.mxu0
    %v539 = vadd.f32 %v357, %v521
    %v540 = vadd.f32 %v371, %v535
    %v541 = vadd.f32 %v359, %v523
    %v542 = vadd.f32 %v373, %v537
    %v543 = vmax.f32 %v539, 0.0
    %v544 = vmax.f32 %v540, 0.0
    %v545 = vmax.f32 %v541, 0.0
    %v546 = vmax.f32 %v542, 0.0
    %v547 = vpack.c.bf16 %v545, %v543
    %v548 = vpack.c.bf16 %v546, %v544
    %v549 = vld [vmem:[#allocation8] sm:$0xf]
    %v550 = vld [vmem:[#allocation8 + $0x4] sm:$0xf]
    %v551 = vld [vmem:[#allocation8 + $0x8] sm:$0xf]
    %v552 = vld [vmem:[#allocation8 + $0xc] sm:$0xf]
    %v553 = vld [vmem:[#allocation8 + $0x10] sm:$0xf]
    %v554 = vld [vmem:[#allocation8 + $0x14] sm:$0xf]
    %v555 = vld [vmem:[#allocation8 + $0x18] sm:$0xf]
    %v556 = vld [vmem:[#allocation8 + $0x1c] sm:$0xf]
    %v557 = vld [vmem:[#allocation8 + $0x20] sm:$0xf]
    %v558 = vld [vmem:[#allocation8 + $0x24] sm:$0xf]
    %v559 = vld [vmem:[#allocation8 + $0x28] sm:$0xf]
    %v560 = vld [vmem:[#allocation8 + $0x2c] sm:$0xf]
    %v561 = vld [vmem:[#allocation8 + $0x30] sm:$0xf]
    %v562 = vld [vmem:[#allocation8 + $0x34] sm:$0xf]
    %v563 = vld [vmem:[#allocation8 + $0x38] sm:$0xf]
    %v564 = vld [vmem:[#allocation8 + $0x3c] sm:$0xf]
    %v565 = vld [vmem:[#allocation8 + $0x40] sm:$0xf]
    %v566 = vld [vmem:[#allocation8 + $0x44] sm:$0xf]
    %v567 = vld [vmem:[#allocation8 + $0x48] sm:$0xf]
    %v568 = vld [vmem:[#allocation8 + $0x4c] sm:$0xf]
    %v569 = vld [vmem:[#allocation8 + $0x50] sm:$0xf]
    %v570 = vld [vmem:[#allocation8 + $0x54] sm:$0xf]
    %v571 = vld [vmem:[#allocation8 + $0x58] sm:$0xf]
    %v572 = vld [vmem:[#allocation8 + $0x5c] sm:$0xf]
    %v573 = vld [vmem:[#allocation8 + $0x60] sm:$0xf]
    %v574 = vld [vmem:[#allocation8 + $0x64] sm:$0xf]
    %v575 = vld [vmem:[#allocation8 + $0x68] sm:$0xf]
    %v576 = vld [vmem:[#allocation8 + $0x6c] sm:$0xf]
    %v577 = vld [vmem:[#allocation8 + $0x70] sm:$0xf]
    %v578 = vld [vmem:[#allocation8 + $0x74] sm:$0xf]
    %v579 = vld [vmem:[#allocation8 + $0x78] sm:$0xf]
    %v580 = vld [vmem:[#allocation8 + $0x7c] sm:$0xf]
    %v613 = vunpack.c.l.b16 %v549
    %v614 = vunpack.c.l.b16 %v550
    %v615 = vunpack.c.l.b16 %v551
    %v616 = vunpack.c.l.b16 %v552
    %v617 = vunpack.c.l.b16 %v553
    %v618 = vunpack.c.l.b16 %v554
    %v619 = vunpack.c.l.b16 %v555
    %v620 = vunpack.c.l.b16 %v556
    %v621 = vunpack.c.l.b16 %v557
    %v622 = vunpack.c.l.b16 %v558
    %v623 = vunpack.c.l.b16 %v559
    %v624 = vunpack.c.l.b16 %v560
    %v625 = vunpack.c.l.b16 %v561
    %v626 = vunpack.c.l.b16 %v562
    %v627 = vunpack.c.l.b16 %v563
    %v628 = vunpack.c.l.b16 %v564
    %v629 = vunpack.c.l.b16 %v565
    %v630 = vunpack.c.l.b16 %v566
    %v631 = vunpack.c.l.b16 %v567
    %v632 = vunpack.c.l.b16 %v568
    %v633 = vunpack.c.l.b16 %v569
    %v634 = vunpack.c.l.b16 %v570
    %v635 = vunpack.c.l.b16 %v571
    %v636 = vunpack.c.l.b16 %v572
    %v637 = vunpack.c.l.b16 %v573
    %v638 = vunpack.c.l.b16 %v574
    %v639 = vunpack.c.l.b16 %v575
    %v640 = vunpack.c.l.b16 %v576
    %v641 = vunpack.c.l.b16 %v577
    %v642 = vunpack.c.l.b16 %v578
    %v643 = vunpack.c.l.b16 %v579
    %v644 = vunpack.c.l.b16 %v580
    %v645 = vpack.c.b16 %v614, %v613
    %v646 = vpack.c.b16 %v616, %v615
    %v647 = vpack.c.b16 %v618, %v617
    %v648 = vpack.c.b16 %v620, %v619
    %v649 = vpack.c.b16 %v622, %v621
    %v650 = vpack.c.b16 %v624, %v623
    %v651 = vpack.c.b16 %v626, %v625
    %v652 = vpack.c.b16 %v628, %v627
    %v653 = vpack.c.b16 %v630, %v629
    %v654 = vpack.c.b16 %v632, %v631
    %v655 = vpack.c.b16 %v634, %v633
    %v656 = vpack.c.b16 %v636, %v635
    %v657 = vpack.c.b16 %v638, %v637
    %v658 = vpack.c.b16 %v640, %v639
    %v659 = vpack.c.b16 %v642, %v641
    %v660 = vpack.c.b16 %v644, %v643
    %677 = vmatpush.bf16.msra.mxu0 %v652
    %678 = vmatpush.bf16.msra.mxu0 %v651
    %679 = vmatpush.bf16.msra.mxu0 %v650
    %680 = vmatpush.bf16.msra.mxu0 %v649
    %681 = vmatpush.bf16.msra.mxu0 %v648
    %682 = vmatpush.bf16.msra.mxu0 %v647
    %683 = vmatpush.bf16.msra.mxu0 %v646
    %684 = vmatpush.bf16.msra.mxu0 %v645
    %685 = vmatmul.bf16.gmra.mxu0 %v547
    %v686 = vpop.f32.mrf.mxu0
    %v687 = vadd.f32 0.0, %v686
    %v688 = vpop.f32.mrf.mxu0
    %v689 = vadd.f32 0.0, %v688
    %690 = vdwg.mxu0
    %691 = vmatpush.bf16.msra.mxu0 %v660
    %692 = vmatpush.bf16.msra.mxu0 %v659
    %693 = vmatpush.bf16.msra.mxu0 %v658
    %694 = vmatpush.bf16.msra.mxu0 %v657
    %695 = vmatpush.bf16.msra.mxu0 %v656
    %696 = vmatpush.bf16.msra.mxu0 %v655
    %697 = vmatpush.bf16.msra.mxu0 %v654
    %698 = vmatpush.bf16.msra.mxu0 %v653
    %699 = vmatmul.bf16.gmra.mxu0 %v548
    %v700 = vpop.f32.mrf.mxu0
    %v701 = vadd.f32 %v687, %v700
    %v702 = vpop.f32.mrf.mxu0
    %v703 = vadd.f32 %v689, %v702
    %704 = vdwg.mxu0
    %v705 = vadd.f32 %v75, %v701
    %v706 = vadd.f32 %v76, %v703
    %v707 = vmax.f32 %v705, 0.0
    %v708 = vmax.f32 %v706, 0.0
    %v709 = vpack.c.bf16 %v707, %v707
    %v710 = vpack.c.bf16 %v708, %v708
    %711 = vst [vmem:[#allocation2 + $0x8] sm:$0xf] %v709
    %712 = vst [vmem:[#allocation2 + $0x18] sm:$0xf] %v710
    %v713 = vld [vmem:[#allocation2 + $0x4] sm:$0x8]
    %v714 = vld [vmem:[#allocation2 + $0x8] sm:$0xf]
    %v715 = vld [vmem:[#allocation2 + $0x14] sm:$0x8]
    %v716 = vld [vmem:[#allocation2 + $0x18] sm:$0xf]
    %v718 = vshrl.u32 %v713, 16
    %v720 = vrot.slane %v718, 7
    %v721 = vrot.slane %v720, 4
    %v723 = vshrl.u32 %v714, 16
    %v725 = vrot.slane %v723, 7
    %v726 = vshll.u32 %v714, 16
    %v728 = vor.u32 %v725, %v726
    %v729 = vsel %vm89, %v721, %v728
    %v731 = vshrl.u32 %v715, 16
    %v733 = vrot.slane %v731, 7
    %v734 = vrot.slane %v733, 4
    %v736 = vshrl.u32 %v716, 16
    %v738 = vrot.slane %v736, 7
    %v739 = vshll.u32 %v716, 16
    %v741 = vor.u32 %v738, %v739
    %v742 = vsel %vm89, %v734, %v741
    %v743 = vld [vmem:[#allocation6] sm:$0xff]
    %v744 = vld [vmem:[#allocation6 + $0x8] sm:$0xff]
    %v745 = vld [vmem:[#allocation6 + $0x10] sm:$0xff]
    %v746 = vld [vmem:[#allocation6 + $0x18] sm:$0xff]
    %v747 = vld [vmem:[#allocation6 + $0x20] sm:$0xff]
    %v748 = vld [vmem:[#allocation6 + $0x28] sm:$0xff]
    %v749 = vld [vmem:[#allocation6 + $0x30] sm:$0xff]
    %v750 = vld [vmem:[#allocation6 + $0x38] sm:$0xff]
    %v751 = vld [vmem:[#allocation6 + $0x40] sm:$0xff]
    %v752 = vld [vmem:[#allocation6 + $0x48] sm:$0xff]
    %v753 = vld [vmem:[#allocation6 + $0x50] sm:$0xff]
    %v754 = vld [vmem:[#allocation6 + $0x58] sm:$0xff]
    %v755 = vld [vmem:[#allocation6 + $0x60] sm:$0xff]
    %v756 = vld [vmem:[#allocation6 + $0x68] sm:$0xff]
    %v757 = vld [vmem:[#allocation6 + $0x70] sm:$0xff]
    %v758 = vld [vmem:[#allocation6 + $0x78] sm:$0xff]
    %v759 = vld [vmem:[%s132] sm:$0xff]
    %v760 = vld [vmem:[%s132 + $0x8] sm:$0xff]
    %v761 = vld [vmem:[%s132 + $0x10] sm:$0xff]
    %v762 = vld [vmem:[%s132 + $0x18] sm:$0xff]
    %v763 = vld [vmem:[%s132 + $0x20] sm:$0xff]
    %v764 = vld [vmem:[%s132 + $0x28] sm:$0xff]
    %v765 = vld [vmem:[%s132 + $0x30] sm:$0xff]
    %v766 = vld [vmem:[%s132 + $0x38] sm:$0xff]
    %v767 = vld [vmem:[%s132 + $0x40] sm:$0xff]
    %v768 = vld [vmem:[%s132 + $0x48] sm:$0xff]
    %v769 = vld [vmem:[%s132 + $0x50] sm:$0xff]
    %v770 = vld [vmem:[%s132 + $0x58] sm:$0xff]
    %v771 = vld [vmem:[%s132 + $0x60] sm:$0xff]
    %v772 = vld [vmem:[%s132 + $0x68] sm:$0xff]
    %v773 = vld [vmem:[%s132 + $0x70] sm:$0xff]
    %v774 = vld [vmem:[%s132 + $0x78] sm:$0xff]
    %v777 = vunpack.c.l.b16 %v714
    %v778 = vunpack.c.l.b16 %v716
    %v779 = vpack.c.b16 %v778, %v777
    %v797 = vunpack.c.l.b16 %v759
    %v798 = vunpack.c.h.b16 %v759
    %v799 = vunpack.c.l.b16 %v760
    %v800 = vunpack.c.h.b16 %v760
    %v801 = vunpack.c.l.b16 %v761
    %v802 = vunpack.c.h.b16 %v761
    %v803 = vunpack.c.l.b16 %v762
    %v804 = vunpack.c.h.b16 %v762
    %v805 = vunpack.c.l.b16 %v763
    %v806 = vunpack.c.h.b16 %v763
    %v807 = vunpack.c.l.b16 %v764
    %v808 = vunpack.c.h.b16 %v764
    %v809 = vunpack.c.l.b16 %v765
    %v810 = vunpack.c.h.b16 %v765
    %v811 = vunpack.c.l.b16 %v766
    %v812 = vunpack.c.h.b16 %v766
    %v813 = vunpack.c.l.b16 %v767
    %v814 = vunpack.c.h.b16 %v767
    %v815 = vunpack.c.l.b16 %v768
    %v816 = vunpack.c.h.b16 %v768
    %v817 = vunpack.c.l.b16 %v769
    %v818 = vunpack.c.h.b16 %v769
    %v819 = vunpack.c.l.b16 %v770
    %v820 = vunpack.c.h.b16 %v770
    %v821 = vunpack.c.l.b16 %v771
    %v822 = vunpack.c.h.b16 %v771
    %v823 = vunpack.c.l.b16 %v772
    %v824 = vunpack.c.h.b16 %v772
    %v825 = vunpack.c.l.b16 %v773
    %v826 = vunpack.c.h.b16 %v773
    %v827 = vunpack.c.l.b16 %v774
    %v828 = vunpack.c.h.b16 %v774
    %v829 = vpack.c.b16 %v799, %v797
    %v830 = vpack.c.b16 %v800, %v798
    %v831 = vpack.c.b16 %v803, %v801
    %v832 = vpack.c.b16 %v804, %v802
    %v833 = vpack.c.b16 %v807, %v805
    %v834 = vpack.c.b16 %v808, %v806
    %v835 = vpack.c.b16 %v811, %v809
    %v836 = vpack.c.b16 %v812, %v810
    %v837 = vpack.c.b16 %v815, %v813
    %v838 = vpack.c.b16 %v816, %v814
    %v839 = vpack.c.b16 %v819, %v817
    %v840 = vpack.c.b16 %v820, %v818
    %v841 = vpack.c.b16 %v823, %v821
    %v842 = vpack.c.b16 %v824, %v822
    %v843 = vpack.c.b16 %v827, %v825
    %v844 = vpack.c.b16 %v828, %v826
    %861 = vmatpush.bf16.msra.mxu0 %v843
    %862 = vmatpush.bf16.msra.mxu0 %v841
    %863 = vmatpush.bf16.msra.mxu0 %v839
    %864 = vmatpush.bf16.msra.mxu0 %v837
    %865 = vmatpush.bf16.msra.mxu0 %v835
    %866 = vmatpush.bf16.msra.mxu0 %v833
    %867 = vmatpush.bf16.msra.mxu0 %v831
    %868 = vmatpush.bf16.msra.mxu0 %v829
    %869 = vmatmul.bf16.gmra.mxu0 %v779
    %v870 = vpop.f32.mrf.mxu0
    %v871 = vadd.f32 0.0, %v870
    %v872 = vpop.f32.mrf.mxu0
    %v873 = vadd.f32 0.0, %v872
    %874 = vdwg.mxu0
    %875 = vmatpush.bf16.msra.mxu0 %v844
    %876 = vmatpush.bf16.msra.mxu0 %v842
    %877 = vmatpush.bf16.msra.mxu0 %v840
    %878 = vmatpush.bf16.msra.mxu0 %v838
    %879 = vmatpush.bf16.msra.mxu0 %v836
    %880 = vmatpush.bf16.msra.mxu0 %v834
    %881 = vmatpush.bf16.msra.mxu0 %v832
    %882 = vmatpush.bf16.msra.mxu0 %v830
    %883 = vmatmul.bf16.gmra.mxu0 %v779
    %v884 = vpop.f32.mrf.mxu0
    %v885 = vadd.f32 0.0, %v884
    %v886 = vpop.f32.mrf.mxu0
    %v887 = vadd.f32 0.0, %v886
    %888 = vdwg.mxu0
    %v889 = vunpack.c.l.b16 %v729
    %v890 = vunpack.c.l.b16 %v742
    %v891 = vpack.c.b16 %v890, %v889
    %v909 = vunpack.c.l.b16 %v743
    %v910 = vunpack.c.h.b16 %v743
    %v911 = vunpack.c.l.b16 %v744
    %v912 = vunpack.c.h.b16 %v744
    %v913 = vunpack.c.l.b16 %v745
    %v914 = vunpack.c.h.b16 %v745
    %v915 = vunpack.c.l.b16 %v746
    %v916 = vunpack.c.h.b16 %v746
    %v917 = vunpack.c.l.b16 %v747
    %v918 = vunpack.c.h.b16 %v747
    %v919 = vunpack.c.l.b16 %v748
    %v920 = vunpack.c.h.b16 %v748
    %v921 = vunpack.c.l.b16 %v749
    %v922 = vunpack.c.h.b16 %v749
    %v923 = vunpack.c.l.b16 %v750
    %v924 = vunpack.c.h.b16 %v750
    %v925 = vunpack.c.l.b16 %v751
    %v926 = vunpack.c.h.b16 %v751
    %v927 = vunpack.c.l.b16 %v752
    %v928 = vunpack.c.h.b16 %v752
    %v929 = vunpack.c.l.b16 %v753
    %v930 = vunpack.c.h.b16 %v753
    %v931 = vunpack.c.l.b16 %v754
    %v932 = vunpack.c.h.b16 %v754
    %v933 = vunpack.c.l.b16 %v755
    %v934 = vunpack.c.h.b16 %v755
    %v935 = vunpack.c.l.b16 %v756
    %v936 = vunpack.c.h.b16 %v756
    %v937 = vunpack.c.l.b16 %v757
    %v938 = vunpack.c.h.b16 %v757
    %v939 = vunpack.c.l.b16 %v758
    %v940 = vunpack.c.h.b16 %v758
    %v941 = vpack.c.b16 %v911, %v909
    %v942 = vpack.c.b16 %v912, %v910
    %v943 = vpack.c.b16 %v915, %v913
    %v944 = vpack.c.b16 %v916, %v914
    %v945 = vpack.c.b16 %v919, %v917
    %v946 = vpack.c.b16 %v920, %v918
    %v947 = vpack.c.b16 %v923, %v921
    %v948 = vpack.c.b16 %v924, %v922
    %v949 = vpack.c.b16 %v927, %v925
    %v950 = vpack.c.b16 %v928, %v926
    %v951 = vpack.c.b16 %v931, %v929
    %v952 = vpack.c.b16 %v932, %v930
    %v953 = vpack.c.b16 %v935, %v933
    %v954 = vpack.c.b16 %v936, %v934
    %v955 = vpack.c.b16 %v939, %v937
    %v956 = vpack.c.b16 %v940, %v938
    %973 = vmatpush.bf16.msra.mxu0 %v955
    %974 = vmatpush.bf16.msra.mxu0 %v953
    %975 = vmatpush.bf16.msra.mxu0 %v951
    %976 = vmatpush.bf16.msra.mxu0 %v949
    %977 = vmatpush.bf16.msra.mxu0 %v947
    %978 = vmatpush.bf16.msra.mxu0 %v945
    %979 = vmatpush.bf16.msra.mxu0 %v943
    %980 = vmatpush.bf16.msra.mxu0 %v941
    %981 = vmatmul.bf16.gmra.mxu0 %v891
    %v982 = vpop.f32.mrf.mxu0
    %v983 = vadd.f32 %v871, %v982
    %v984 = vpop.f32.mrf.mxu0
    %v985 = vadd.f32 %v873, %v984
    %986 = vdwg.mxu0
    %987 = vmatpush.bf16.msra.mxu0 %v956
    %988 = vmatpush.bf16.msra.mxu0 %v954
    %989 = vmatpush.bf16.msra.mxu0 %v952
    %990 = vmatpush.bf16.msra.mxu0 %v950
    %991 = vmatpush.bf16.msra.mxu0 %v948
    %992 = vmatpush.bf16.msra.mxu0 %v946
    %993 = vmatpush.bf16.msra.mxu0 %v944
    %994 = vmatpush.bf16.msra.mxu0 %v942
    %995 = vmatmul.bf16.gmra.mxu0 %v891
    %v996 = vpop.f32.mrf.mxu0
    %v997 = vadd.f32 %v885, %v996
    %v998 = vpop.f32.mrf.mxu0
    %v999 = vadd.f32 %v887, %v998
    %1000 = vdwg.mxu0
    %v1001 = vld [vmem:[#allocation2 + $0x8] sm:$0xf]
    %v1002 = vld [vmem:[#allocation2 + $0xc] sm:$0x1]
    %v1003 = vld [vmem:[#allocation2 + $0x18] sm:$0xf]
    %v1004 = vld [vmem:[#allocation2 + $0x1c] sm:$0x1]
    %v1006 = vshrl.u32 %v1001, 16
    %v1008 = vrot.slane %v1006, 4
    %v1009 = vshll.u32 %v1001, 16
    %v1011 = vrot.slane %v1009, 5
    %v1012 = vor.u32 %v1008, %v1011
    %v1013 = vrot.slane %v1012, 4
    %v1015 = vshll.u32 %v1002, 16
    %v1017 = vrot.slane %v1015, 5
    %v1018 = vsel %vm381, %v1013, %v1017
    %v1020 = vshrl.u32 %v1003, 16
    %v1022 = vrot.slane %v1020, 4
    %v1023 = vshll.u32 %v1003, 16
    %v1025 = vrot.slane %v1023, 5
    %v1026 = vor.u32 %v1022, %v1025
    %v1027 = vrot.slane %v1026, 4
    %v1029 = vshll.u32 %v1004, 16
    %v1031 = vrot.slane %v1029, 5
    %v1032 = vsel %vm381, %v1027, %v1031
    %v1033 = vld [vmem:[%s410] sm:$0xff]
    %v1034 = vld [vmem:[%s410 + $0x8] sm:$0xff]
    %v1035 = vld [vmem:[%s410 + $0x10] sm:$0xff]
    %v1036 = vld [vmem:[%s410 + $0x18] sm:$0xff]
    %v1037 = vld [vmem:[%s410 + $0x20] sm:$0xff]
    %v1038 = vld [vmem:[%s410 + $0x28] sm:$0xff]
    %v1039 = vld [vmem:[%s410 + $0x30] sm:$0xff]
    %v1040 = vld [vmem:[%s410 + $0x38] sm:$0xff]
    %v1041 = vld [vmem:[%s410 + $0x40] sm:$0xff]
    %v1042 = vld [vmem:[%s410 + $0x48] sm:$0xff]
    %v1043 = vld [vmem:[%s410 + $0x50] sm:$0xff]
    %v1044 = vld [vmem:[%s410 + $0x58] sm:$0xff]
    %v1045 = vld [vmem:[%s410 + $0x60] sm:$0xff]
    %v1046 = vld [vmem:[%s410 + $0x68] sm:$0xff]
    %v1047 = vld [vmem:[%s410 + $0x70] sm:$0xff]
    %v1048 = vld [vmem:[%s410 + $0x78] sm:$0xff]
    %v1049 = vunpack.c.l.b16 %v1018
    %v1050 = vunpack.c.l.b16 %v1032
    %v1051 = vpack.c.b16 %v1050, %v1049
    %v1069 = vunpack.c.l.b16 %v1033
    %v1070 = vunpack.c.h.b16 %v1033
    %v1071 = vunpack.c.l.b16 %v1034
    %v1072 = vunpack.c.h.b16 %v1034
    %v1073 = vunpack.c.l.b16 %v1035
    %v1074 = vunpack.c.h.b16 %v1035
    %v1075 = vunpack.c.l.b16 %v1036
    %v1076 = vunpack.c.h.b16 %v1036
    %v1077 = vunpack.c.l.b16 %v1037
    %v1078 = vunpack.c.h.b16 %v1037
    %v1079 = vunpack.c.l.b16 %v1038
    %v1080 = vunpack.c.h.b16 %v1038
    %v1081 = vunpack.c.l.b16 %v1039
    %v1082 = vunpack.c.h.b16 %v1039
    %v1083 = vunpack.c.l.b16 %v1040
    %v1084 = vunpack.c.h.b16 %v1040
    %v1085 = vunpack.c.l.b16 %v1041
    %v1086 = vunpack.c.h.b16 %v1041
    %v1087 = vunpack.c.l.b16 %v1042
    %v1088 = vunpack.c.h.b16 %v1042
    %v1089 = vunpack.c.l.b16 %v1043
    %v1090 = vunpack.c.h.b16 %v1043
    %v1091 = vunpack.c.l.b16 %v1044
    %v1092 = vunpack.c.h.b16 %v1044
    %v1093 = vunpack.c.l.b16 %v1045
    %v1094 = vunpack.c.h.b16 %v1045
    %v1095 = vunpack.c.l.b16 %v1046
    %v1096 = vunpack.c.h.b16 %v1046
    %v1097 = vunpack.c.l.b16 %v1047
    %v1098 = vunpack.c.h.b16 %v1047
    %v1099 = vunpack.c.l.b16 %v1048
    %v1100 = vunpack.c.h.b16 %v1048
    %v1101 = vpack.c.b16 %v1071, %v1069
    %v1102 = vpack.c.b16 %v1072, %v1070
    %v1103 = vpack.c.b16 %v1075, %v1073
    %v1104 = vpack.c.b16 %v1076, %v1074
    %v1105 = vpack.c.b16 %v1079, %v1077
    %v1106 = vpack.c.b16 %v1080, %v1078
    %v1107 = vpack.c.b16 %v1083, %v1081
    %v1108 = vpack.c.b16 %v1084, %v1082
    %v1109 = vpack.c.b16 %v1087, %v1085
    %v1110 = vpack.c.b16 %v1088, %v1086
    %v1111 = vpack.c.b16 %v1091, %v1089
    %v1112 = vpack.c.b16 %v1092, %v1090
    %v1113 = vpack.c.b16 %v1095, %v1093
    %v1114 = vpack.c.b16 %v1096, %v1094
    %v1115 = vpack.c.b16 %v1099, %v1097
    %v1116 = vpack.c.b16 %v1100, %v1098
    %1133 = vmatpush.bf16.msra.mxu0 %v1115
    %1134 = vmatpush.bf16.msra.mxu0 %v1113
    %1135 = vmatpush.bf16.msra.mxu0 %v1111
    %1136 = vmatpush.bf16.msra.mxu0 %v1109
    %1137 = vmatpush.bf16.msra.mxu0 %v1107
    %1138 = vmatpush.bf16.msra.mxu0 %v1105
    %1139 = vmatpush.bf16.msra.mxu0 %v1103
    %1140 = vmatpush.bf16.msra.mxu0 %v1101
    %1141 = vmatmul.bf16.gmra.mxu0 %v1051
    %v1142 = vpop.f32.mrf.mxu0
    %v1143 = vadd.f32 0.0, %v1142
    %v1144 = vpop.f32.mrf.mxu0
    %v1145 = vadd.f32 0.0, %v1144
    %1146 = vdwg.mxu0
    %1147 = vmatpush.bf16.msra.mxu0 %v1116
    %1148 = vmatpush.bf16.msra.mxu0 %v1114
    %1149 = vmatpush.bf16.msra.mxu0 %v1112
    %1150 = vmatpush.bf16.msra.mxu0 %v1110
    %1151 = vmatpush.bf16.msra.mxu0 %v1108
    %1152 = vmatpush.bf16.msra.mxu0 %v1106
    %1153 = vmatpush.bf16.msra.mxu0 %v1104
    %1154 = vmatpush.bf16.msra.mxu0 %v1102
    %1155 = vmatmul.bf16.gmra.mxu0 %v1051
    %v1156 = vpop.f32.mrf.mxu0
    %v1157 = vadd.f32 0.0, %v1156
    %v1158 = vpop.f32.mrf.mxu0
    %v1159 = vadd.f32 0.0, %v1158
    %1160 = vdwg.mxu0
    %v1161 = vadd.f32 %v983, %v1143
    %v1162 = vadd.f32 %v997, %v1157
    %v1163 = vadd.f32 %v985, %v1145
    %v1164 = vadd.f32 %v999, %v1159
    %v1165 = vmax.f32 %v1161, 0.0
    %v1166 = vmax.f32 %v1162, 0.0
    %v1167 = vmax.f32 %v1163, 0.0
    %v1168 = vmax.f32 %v1164, 0.0
    %v1169 = vpack.c.bf16 %v1167, %v1165
    %v1170 = vpack.c.bf16 %v1168, %v1166
    %v1171 = vld [vmem:[#allocation8] sm:$0xf]
    %v1172 = vld [vmem:[#allocation8 + $0x4] sm:$0xf]
    %v1173 = vld [vmem:[#allocation8 + $0x8] sm:$0xf]
    %v1174 = vld [vmem:[#allocation8 + $0xc] sm:$0xf]
    %v1175 = vld [vmem:[#allocation8 + $0x10] sm:$0xf]
    %v1176 = vld [vmem:[#allocation8 + $0x14] sm:$0xf]
    %v1177 = vld [vmem:[#allocation8 + $0x18] sm:$0xf]
    %v1178 = vld [vmem:[#allocation8 + $0x1c] sm:$0xf]
    %v1179 = vld [vmem:[#allocation8 + $0x20] sm:$0xf]
    %v1180 = vld [vmem:[#allocation8 + $0x24] sm:$0xf]
    %v1181 = vld [vmem:[#allocation8 + $0x28] sm:$0xf]
    %v1182 = vld [vmem:[#allocation8 + $0x2c] sm:$0xf]
    %v1183 = vld [vmem:[#allocation8 + $0x30] sm:$0xf]
    %v1184 = vld [vmem:[#allocation8 + $0x34] sm:$0xf]
    %v1185 = vld [vmem:[#allocation8 + $0x38] sm:$0xf]
    %v1186 = vld [vmem:[#allocation8 + $0x3c] sm:$0xf]
    %v1187 = vld [vmem:[#allocation8 + $0x40] sm:$0xf]
    %v1188 = vld [vmem:[#allocation8 + $0x44] sm:$0xf]
    %v1189 = vld [vmem:[#allocation8 + $0x48] sm:$0xf]
    %v1190 = vld [vmem:[#allocation8 + $0x4c] sm:$0xf]
    %v1191 = vld [vmem:[#allocation8 + $0x50] sm:$0xf]
    %v1192 = vld [vmem:[#allocation8 + $0x54] sm:$0xf]
    %v1193 = vld [vmem:[#allocation8 + $0x58] sm:$0xf]
    %v1194 = vld [vmem:[#allocation8 + $0x5c] sm:$0xf]
    %v1195 = vld [vmem:[#allocation8 + $0x60] sm:$0xf]
    %v1196 = vld [vmem:[#allocation8 + $0x64] sm:$0xf]
    %v1197 = vld [vmem:[#allocation8 + $0x68] sm:$0xf]
    %v1198 = vld [vmem:[#allocation8 + $0x6c] sm:$0xf]
    %v1199 = vld [vmem:[#allocation8 + $0x70] sm:$0xf]
    %v1200 = vld [vmem:[#allocation8 + $0x74] sm:$0xf]
    %v1201 = vld [vmem:[#allocation8 + $0x78] sm:$0xf]
    %v1202 = vld [vmem:[#allocation8 + $0x7c] sm:$0xf]
    %v1235 = vunpack.c.l.b16 %v1171
    %v1236 = vunpack.c.l.b16 %v1172
    %v1237 = vunpack.c.l.b16 %v1173
    %v1238 = vunpack.c.l.b16 %v1174
    %v1239 = vunpack.c.l.b16 %v1175
    %v1240 = vunpack.c.l.b16 %v1176
    %v1241 = vunpack.c.l.b16 %v1177
    %v1242 = vunpack.c.l.b16 %v1178
    %v1243 = vunpack.c.l.b16 %v1179
    %v1244 = vunpack.c.l.b16 %v1180
    %v1245 = vunpack.c.l.b16 %v1181
    %v1246 = vunpack.c.l.b16 %v1182
    %v1247 = vunpack.c.l.b16 %v1183
    %v1248 = vunpack.c.l.b16 %v1184
    %v1249 = vunpack.c.l.b16 %v1185
    %v1250 = vunpack.c.l.b16 %v1186
    %v1251 = vunpack.c.l.b16 %v1187
    %v1252 = vunpack.c.l.b16 %v1188
    %v1253 = vunpack.c.l.b16 %v1189
    %v1254 = vunpack.c.l.b16 %v1190
    %v1255 = vunpack.c.l.b16 %v1191
    %v1256 = vunpack.c.l.b16 %v1192
    %v1257 = vunpack.c.l.b16 %v1193
    %v1258 = vunpack.c.l.b16 %v1194
    %v1259 = vunpack.c.l.b16 %v1195
    %v1260 = vunpack.c.l.b16 %v1196
    %v1261 = vunpack.c.l.b16 %v1197
    %v1262 = vunpack.c.l.b16 %v1198
    %v1263 = vunpack.c.l.b16 %v1199
    %v1264 = vunpack.c.l.b16 %v1200
    %v1265 = vunpack.c.l.b16 %v1201
    %v1266 = vunpack.c.l.b16 %v1202
    %v1267 = vpack.c.b16 %v1236, %v1235
    %v1268 = vpack.c.b16 %v1238, %v1237
    %v1269 = vpack.c.b16 %v1240, %v1239
    %v1270 = vpack.c.b16 %v1242, %v1241
    %v1271 = vpack.c.b16 %v1244, %v1243
    %v1272 = vpack.c.b16 %v1246, %v1245
    %v1273 = vpack.c.b16 %v1248, %v1247
    %v1274 = vpack.c.b16 %v1250, %v1249
    %v1275 = vpack.c.b16 %v1252, %v1251
    %v1276 = vpack.c.b16 %v1254, %v1253
    %v1277 = vpack.c.b16 %v1256, %v1255
    %v1278 = vpack.c.b16 %v1258, %v1257
    %v1279 = vpack.c.b16 %v1260, %v1259
    %v1280 = vpack.c.b16 %v1262, %v1261
    %v1281 = vpack.c.b16 %v1264, %v1263
    %v1282 = vpack.c.b16 %v1266, %v1265
    %1299 = vmatpush.bf16.msra.mxu0 %v1274
    %1300 = vmatpush.bf16.msra.mxu0 %v1273
    %1301 = vmatpush.bf16.msra.mxu0 %v1272
    %1302 = vmatpush.bf16.msra.mxu0 %v1271
    %1303 = vmatpush.bf16.msra.mxu0 %v1270
    %1304 = vmatpush.bf16.msra.mxu0 %v1269
    %1305 = vmatpush.bf16.msra.mxu0 %v1268
    %1306 = vmatpush.bf16.msra.mxu0 %v1267
    %1307 = vmatmul.bf16.gmra.mxu0 %v1169
    %v1308 = vpop.f32.mrf.mxu0
    %v1309 = vadd.f32 0.0, %v1308
    %v1310 = vpop.f32.mrf.mxu0
    %v1311 = vadd.f32 0.0, %v1310
    %1312 = vdwg.mxu0
    %1313 = vmatpush.bf16.msra.mxu0 %v1282
    %1314 = vmatpush.bf16.msra.mxu0 %v1281
    %1315 = vmatpush.bf16.msra.mxu0 %v1280
    %1316 = vmatpush.bf16.msra.mxu0 %v1279
    %1317 = vmatpush.bf16.msra.mxu0 %v1278
    %1318 = vmatpush.bf16.msra.mxu0 %v1277
    %1319 = vmatpush.bf16.msra.mxu0 %v1276
    %1320 = vmatpush.bf16.msra.mxu0 %v1275
    %1321 = vmatmul.bf16.gmra.mxu0 %v1170
    %v1322 = vpop.f32.mrf.mxu0
    %v1323 = vadd.f32 %v1309, %v1322
    %v1324 = vpop.f32.mrf.mxu0
    %v1325 = vadd.f32 %v1311, %v1324
    %1326 = vdwg.mxu0
    %v1327 = vadd.f32 %v705, %v1323
    %v1328 = vadd.f32 %v706, %v1325
    %v1329 = vmax.f32 %v1327, 0.0
    %v1330 = vmax.f32 %v1328, 0.0
    %v1331 = vpack.c.bf16 %v1329, %v1329
    %v1332 = vpack.c.bf16 %v1330, %v1330
    %1333 = vst [vmem:[#allocation2 + $0x8] sm:$0xf] %v1331
    %1334 = vst [vmem:[#allocation2 + $0x18] sm:$0xf] %v1332
    %v1335 = vld [vmem:[#allocation2 + $0x4] sm:$0x8]
    %v1336 = vld [vmem:[#allocation2 + $0x8] sm:$0xf]
    %v1337 = vld [vmem:[#allocation2 + $0x14] sm:$0x8]
    %v1338 = vld [vmem:[#allocation2 + $0x18] sm:$0xf]
    %v1340 = vshrl.u32 %v1335, 16
    %v1342 = vrot.slane %v1340, 7
    %v1343 = vrot.slane %v1342, 4
    %v1345 = vshrl.u32 %v1336, 16
    %v1347 = vrot.slane %v1345, 7
    %v1348 = vshll.u32 %v1336, 16
    %v1350 = vor.u32 %v1347, %v1348
    %v1351 = vsel %vm89, %v1343, %v1350
    %v1353 = vshrl.u32 %v1337, 16
    %v1355 = vrot.slane %v1353, 7
    %v1356 = vrot.slane %v1355, 4
    %v1358 = vshrl.u32 %v1338, 16
    %v1360 = vrot.slane %v1358, 7
    %v1361 = vshll.u32 %v1338, 16
    %v1363 = vor.u32 %v1360, %v1361
    %v1364 = vsel %vm89, %v1356, %v1363
    %v1365 = vld [vmem:[#allocation6] sm:$0xff]
    %v1366 = vld [vmem:[#allocation6 + $0x8] sm:$0xff]
    %v1367 = vld [vmem:[#allocation6 + $0x10] sm:$0xff]
    %v1368 = vld [vmem:[#allocation6 + $0x18] sm:$0xff]
    %v1369 = vld [vmem:[#allocation6 + $0x20] sm:$0xff]
    %v1370 = vld [vmem:[#allocation6 + $0x28] sm:$0xff]
    %v1371 = vld [vmem:[#allocation6 + $0x30] sm:$0xff]
    %v1372 = vld [vmem:[#allocation6 + $0x38] sm:$0xff]
    %v1373 = vld [vmem:[#allocation6 + $0x40] sm:$0xff]
    %v1374 = vld [vmem:[#allocation6 + $0x48] sm:$0xff]
    %v1375 = vld [vmem:[#allocation6 + $0x50] sm:$0xff]
    %v1376 = vld [vmem:[#allocation6 + $0x58] sm:$0xff]
    %v1377 = vld [vmem:[#allocation6 + $0x60] sm:$0xff]
    %v1378 = vld [vmem:[#allocation6 + $0x68] sm:$0xff]
    %v1379 = vld [vmem:[#allocation6 + $0x70] sm:$0xff]
    %v1380 = vld [vmem:[#allocation6 + $0x78] sm:$0xff]
    %v1381 = vld [vmem:[%s132] sm:$0xff]
    %v1382 = vld [vmem:[%s132 + $0x8] sm:$0xff]
    %v1383 = vld [vmem:[%s132 + $0x10] sm:$0xff]
    %v1384 = vld [vmem:[%s132 + $0x18] sm:$0xff]
    %v1385 = vld [vmem:[%s132 + $0x20] sm:$0xff]
    %v1386 = vld [vmem:[%s132 + $0x28] sm:$0xff]
    %v1387 = vld [vmem:[%s132 + $0x30] sm:$0xff]
    %v1388 = vld [vmem:[%s132 + $0x38] sm:$0xff]
    %v1389 = vld [vmem:[%s132 + $0x40] sm:$0xff]
    %v1390 = vld [vmem:[%s132 + $0x48] sm:$0xff]
    %v1391 = vld [vmem:[%s132 + $0x50] sm:$0xff]
    %v1392 = vld [vmem:[%s132 + $0x58] sm:$0xff]
    %v1393 = vld [vmem:[%s132 + $0x60] sm:$0xff]
    %v1394 = vld [vmem:[%s132 + $0x68] sm:$0xff]
    %v1395 = vld [vmem:[%s132 + $0x70] sm:$0xff]
    %v1396 = vld [vmem:[%s132 + $0x78] sm:$0xff]
    %v1399 = vunpack.c.l.b16 %v1336
    %v1400 = vunpack.c.l.b16 %v1338
    %v1401 = vpack.c.b16 %v1400, %v1399
    %v1419 = vunpack.c.l.b16 %v1381
    %v1420 = vunpack.c.h.b16 %v1381
    %v1421 = vunpack.c.l.b16 %v1382
    %v1422 = vunpack.c.h.b16 %v1382
    %v1423 = vunpack.c.l.b16 %v1383
    %v1424 = vunpack.c.h.b16 %v1383
    %v1425 = vunpack.c.l.b16 %v1384
    %v1426 = vunpack.c.h.b16 %v1384
    %v1427 = vunpack.c.l.b16 %v1385
    %v1428 = vunpack.c.h.b16 %v1385
    %v1429 = vunpack.c.l.b16 %v1386
    %v1430 = vunpack.c.h.b16 %v1386
    %v1431 = vunpack.c.l.b16 %v1387
    %v1432 = vunpack.c.h.b16 %v1387
    %v1433 = vunpack.c.l.b16 %v1388
    %v1434 = vunpack.c.h.b16 %v1388
    %v1435 = vunpack.c.l.b16 %v1389
    %v1436 = vunpack.c.h.b16 %v1389
    %v1437 = vunpack.c.l.b16 %v1390
    %v1438 = vunpack.c.h.b16 %v1390
    %v1439 = vunpack.c.l.b16 %v1391
    %v1440 = vunpack.c.h.b16 %v1391
    %v1441 = vunpack.c.l.b16 %v1392
    %v1442 = vunpack.c.h.b16 %v1392
    %v1443 = vunpack.c.l.b16 %v1393
    %v1444 = vunpack.c.h.b16 %v1393
    %v1445 = vunpack.c.l.b16 %v1394
    %v1446 = vunpack.c.h.b16 %v1394
    %v1447 = vunpack.c.l.b16 %v1395
    %v1448 = vunpack.c.h.b16 %v1395
    %v1449 = vunpack.c.l.b16 %v1396
    %v1450 = vunpack.c.h.b16 %v1396
    %v1451 = vpack.c.b16 %v1421, %v1419
    %v1452 = vpack.c.b16 %v1422, %v1420
    %v1453 = vpack.c.b16 %v1425, %v1423
    %v1454 = vpack.c.b16 %v1426, %v1424
    %v1455 = vpack.c.b16 %v1429, %v1427
    %v1456 = vpack.c.b16 %v1430, %v1428
    %v1457 = vpack.c.b16 %v1433, %v1431
    %v1458 = vpack.c.b16 %v1434, %v1432
    %v1459 = vpack.c.b16 %v1437, %v1435
    %v1460 = vpack.c.b16 %v1438, %v1436
    %v1461 = vpack.c.b16 %v1441, %v1439
    %v1462 = vpack.c.b16 %v1442, %v1440
    %v1463 = vpack.c.b16 %v1445, %v1443
    %v1464 = vpack.c.b16 %v1446, %v1444
    %v1465 = vpack.c.b16 %v1449, %v1447
    %v1466 = vpack.c.b16 %v1450, %v1448
    %1483 = vmatpush.bf16.msra.mxu0 %v1465
    %1484 = vmatpush.bf16.msra.mxu0 %v1463
    %1485 = vmatpush.bf16.msra.mxu0 %v1461
    %1486 = vmatpush.bf16.msra.mxu0 %v1459
    %1487 = vmatpush.bf16.msra.mxu0 %v1457
    %1488 = vmatpush.bf16.msra.mxu0 %v1455
    %1489 = vmatpush.bf16.msra.mxu0 %v1453
    %1490 = vmatpush.bf16.msra.mxu0 %v1451
    %1491 = vmatmul.bf16.gmra.mxu0 %v1401
    %v1492 = vpop.f32.mrf.mxu0
    %v1493 = vadd.f32 0.0, %v1492
    %v1494 = vpop.f32.mrf.mxu0
    %v1495 = vadd.f32 0.0, %v1494
    %1496 = vdwg.mxu0
    %1497 = vmatpush.bf16.msra.mxu0 %v1466
    %1498 = vmatpush.bf16.msra.mxu0 %v1464
    %1499 = vmatpush.bf16.msra.mxu0 %v1462
    %1500 = vmatpush.bf16.msra.mxu0 %v1460
    %1501 = vmatpush.bf16.msra.mxu0 %v1458
    %1502 = vmatpush.bf16.msra.mxu0 %v1456
    %1503 = vmatpush.bf16.msra.mxu0 %v1454
    %1504 = vmatpush.bf16.msra.mxu0 %v1452
    %1505 = vmatmul.bf16.gmra.mxu0 %v1401
    %v1506 = vpop.f32.mrf.mxu0
    %v1507 = vadd.f32 0.0, %v1506
    %v1508 = vpop.f32.mrf.mxu0
    %v1509 = vadd.f32 0.0, %v1508
    %1510 = vdwg.mxu0
    %v1511 = vunpack.c.l.b16 %v1351
    %v1512 = vunpack.c.l.b16 %v1364
    %v1513 = vpack.c.b16 %v1512, %v1511
    %v1531 = vunpack.c.l.b16 %v1365
    %v1532 = vunpack.c.h.b16 %v1365
    %v1533 = vunpack.c.l.b16 %v1366
    %v1534 = vunpack.c.h.b16 %v1366
    %v1535 = vunpack.c.l.b16 %v1367
    %v1536 = vunpack.c.h.b16 %v1367
    %v1537 = vunpack.c.l.b16 %v1368
    %v1538 = vunpack.c.h.b16 %v1368
    %v1539 = vunpack.c.l.b16 %v1369
    %v1540 = vunpack.c.h.b16 %v1369
    %v1541 = vunpack.c.l.b16 %v1370
    %v1542 = vunpack.c.h.b16 %v1370
    %v1543 = vunpack.c.l.b16 %v1371
    %v1544 = vunpack.c.h.b16 %v1371
    %v1545 = vunpack.c.l.b16 %v1372
    %v1546 = vunpack.c.h.b16 %v1372
    %v1547 = vunpack.c.l.b16 %v1373
    %v1548 = vunpack.c.h.b16 %v1373
    %v1549 = vunpack.c.l.b16 %v1374
    %v1550 = vunpack.c.h.b16 %v1374
    %v1551 = vunpack.c.l.b16 %v1375
    %v1552 = vunpack.c.h.b16 %v1375
    %v1553 = vunpack.c.l.b16 %v1376
    %v1554 = vunpack.c.h.b16 %v1376
    %v1555 = vunpack.c.l.b16 %v1377
    %v1556 = vunpack.c.h.b16 %v1377
    %v1557 = vunpack.c.l.b16 %v1378
    %v1558 = vunpack.c.h.b16 %v1378
    %v1559 = vunpack.c.l.b16 %v1379
    %v1560 = vunpack.c.h.b16 %v1379
    %v1561 = vunpack.c.l.b16 %v1380
    %v1562 = vunpack.c.h.b16 %v1380
    %v1563 = vpack.c.b16 %v1533, %v1531
    %v1564 = vpack.c.b16 %v1534, %v1532
    %v1565 = vpack.c.b16 %v1537, %v1535
    %v1566 = vpack.c.b16 %v1538, %v1536
    %v1567 = vpack.c.b16 %v1541, %v1539
    %v1568 = vpack.c.b16 %v1542, %v1540
    %v1569 = vpack.c.b16 %v1545, %v1543
    %v1570 = vpack.c.b16 %v1546, %v1544
    %v1571 = vpack.c.b16 %v1549, %v1547
    %v1572 = vpack.c.b16 %v1550, %v1548
    %v1573 = vpack.c.b16 %v1553, %v1551
    %v1574 = vpack.c.b16 %v1554, %v1552
    %v1575 = vpack.c.b16 %v1557, %v1555
    %v1576 = vpack.c.b16 %v1558, %v1556
    %v1577 = vpack.c.b16 %v1561, %v1559
    %v1578 = vpack.c.b16 %v1562, %v1560
    %1595 = vmatpush.bf16.msra.mxu0 %v1577
    %1596 = vmatpush.bf16.msra.mxu0 %v1575
    %1597 = vmatpush.bf16.msra.mxu0 %v1573
    %1598 = vmatpush.bf16.msra.mxu0 %v1571
    %1599 = vmatpush.bf16.msra.mxu0 %v1569
    %1600 = vmatpush.bf16.msra.mxu0 %v1567
    %1601 = vmatpush.bf16.msra.mxu0 %v1565
    %1602 = vmatpush.bf16.msra.mxu0 %v1563
    %1603 = vmatmul.bf16.gmra.mxu0 %v1513
    %v1604 = vpop.f32.mrf.mxu0
    %v1605 = vadd.f32 %v1493, %v1604
    %v1606 = vpop.f32.mrf.mxu0
    %v1607 = vadd.f32 %v1495, %v1606
    %1608 = vdwg.mxu0
    %1609 = vmatpush.bf16.msra.mxu0 %v1578
    %1610 = vmatpush.bf16.msra.mxu0 %v1576
    %1611 = vmatpush.bf16.msra.mxu0 %v1574
    %1612 = vmatpush.bf16.msra.mxu0 %v1572
    %1613 = vmatpush.bf16.msra.mxu0 %v1570
    %1614 = vmatpush.bf16.msra.mxu0 %v1568
    %1615 = vmatpush.bf16.msra.mxu0 %v1566
    %1616 = vmatpush.bf16.msra.mxu0 %v1564
    %1617 = vmatmul.bf16.gmra.mxu0 %v1513
    %v1618 = vpop.f32.mrf.mxu0
    %v1619 = vadd.f32 %v1507, %v1618
    %v1620 = vpop.f32.mrf.mxu0
    %v1621 = vadd.f32 %v1509, %v1620
    %1622 = vdwg.mxu0
    %v1623 = vld [vmem:[#allocation2 + $0x8] sm:$0xf]
    %v1624 = vld [vmem:[#allocation2 + $0xc] sm:$0x1]
    %v1625 = vld [vmem:[#allocation2 + $0x18] sm:$0xf]
    %v1626 = vld [vmem:[#allocation2 + $0x1c] sm:$0x1]
    %v1628 = vshrl.u32 %v1623, 16
    %v1630 = vrot.slane %v1628, 4
    %v1631 = vshll.u32 %v1623, 16
    %v1633 = vrot.slane %v1631, 5
    %v1634 = vor.u32 %v1630, %v1633
    %v1635 = vrot.slane %v1634, 4
    %v1637 = vshll.u32 %v1624, 16
    %v1639 = vrot.slane %v1637, 5
    %v1640 = vsel %vm381, %v1635, %v1639
    %v1642 = vshrl.u32 %v1625, 16
    %v1644 = vrot.slane %v1642, 4
    %v1645 = vshll.u32 %v1625, 16
    %v1647 = vrot.slane %v1645, 5
    %v1648 = vor.u32 %v1644, %v1647
    %v1649 = vrot.slane %v1648, 4
    %v1651 = vshll.u32 %v1626, 16
    %v1653 = vrot.slane %v1651, 5
    %v1654 = vsel %vm381, %v1649, %v1653
    %v1655 = vld [vmem:[%s410] sm:$0xff]
    %v1656 = vld [vmem:[%s410 + $0x8] sm:$0xff]
    %v1657 = vld [vmem:[%s410 + $0x10] sm:$0xff]
    %v1658 = vld [vmem:[%s410 + $0x18] sm:$0xff]
    %v1659 = vld [vmem:[%s410 + $0x20] sm:$0xff]
    %v1660 = vld [vmem:[%s410 + $0x28] sm:$0xff]
    %v1661 = vld [vmem:[%s410 + $0x30] sm:$0xff]
    %v1662 = vld [vmem:[%s410 + $0x38] sm:$0xff]
    %v1663 = vld [vmem:[%s410 + $0x40] sm:$0xff]
    %v1664 = vld [vmem:[%s410 + $0x48] sm:$0xff]
    %v1665 = vld [vmem:[%s410 + $0x50] sm:$0xff]
    %v1666 = vld [vmem:[%s410 + $0x58] sm:$0xff]
    %v1667 = vld [vmem:[%s410 + $0x60] sm:$0xff]
    %v1668 = vld [vmem:[%s410 + $0x68] sm:$0xff]
    %v1669 = vld [vmem:[%s410 + $0x70] sm:$0xff]
    %v1670 = vld [vmem:[%s410 + $0x78] sm:$0xff]
    %v1671 = vunpack.c.l.b16 %v1640
    %v1672 = vunpack.c.l.b16 %v1654
    %v1673 = vpack.c.b16 %v1672, %v1671
    %v1691 = vunpack.c.l.b16 %v1655
    %v1692 = vunpack.c.h.b16 %v1655
    %v1693 = vunpack.c.l.b16 %v1656
    %v1694 = vunpack.c.h.b16 %v1656
    %v1695 = vunpack.c.l.b16 %v1657
    %v1696 = vunpack.c.h.b16 %v1657
    %v1697 = vunpack.c.l.b16 %v1658
    %v1698 = vunpack.c.h.b16 %v1658
    %v1699 = vunpack.c.l.b16 %v1659
    %v1700 = vunpack.c.h.b16 %v1659
    %v1701 = vunpack.c.l.b16 %v1660
    %v1702 = vunpack.c.h.b16 %v1660
    %v1703 = vunpack.c.l.b16 %v1661
    %v1704 = vunpack.c.h.b16 %v1661
    %v1705 = vunpack.c.l.b16 %v1662
    %v1706 = vunpack.c.h.b16 %v1662
    %v1707 = vunpack.c.l.b16 %v1663
    %v1708 = vunpack.c.h.b16 %v1663
    %v1709 = vunpack.c.l.b16 %v1664
    %v1710 = vunpack.c.h.b16 %v1664
    %v1711 = vunpack.c.l.b16 %v1665
    %v1712 = vunpack.c.h.b16 %v1665
    %v1713 = vunpack.c.l.b16 %v1666
    %v1714 = vunpack.c.h.b16 %v1666
    %v1715 = vunpack.c.l.b16 %v1667
    %v1716 = vunpack.c.h.b16 %v1667
    %v1717 = vunpack.c.l.b16 %v1668
    %v1718 = vunpack.c.h.b16 %v1668
    %v1719 = vunpack.c.l.b16 %v1669
    %v1720 = vunpack.c.h.b16 %v1669
    %v1721 = vunpack.c.l.b16 %v1670
    %v1722 = vunpack.c.h.b16 %v1670
    %v1723 = vpack.c.b16 %v1693, %v1691
    %v1724 = vpack.c.b16 %v1694, %v1692
    %v1725 = vpack.c.b16 %v1697, %v1695
    %v1726 = vpack.c.b16 %v1698, %v1696
    %v1727 = vpack.c.b16 %v1701, %v1699
    %v1728 = vpack.c.b16 %v1702, %v1700
    %v1729 = vpack.c.b16 %v1705, %v1703
    %v1730 = vpack.c.b16 %v1706, %v1704
    %v1731 = vpack.c.b16 %v1709, %v1707
    %v1732 = vpack.c.b16 %v1710, %v1708
    %v1733 = vpack.c.b16 %v1713, %v1711
    %v1734 = vpack.c.b16 %v1714, %v1712
    %v1735 = vpack.c.b16 %v1717, %v1715
    %v1736 = vpack.c.b16 %v1718, %v1716
    %v1737 = vpack.c.b16 %v1721, %v1719
    %v1738 = vpack.c.b16 %v1722, %v1720
    %1755 = vmatpush.bf16.msra.mxu0 %v1737
    %1756 = vmatpush.bf16.msra.mxu0 %v1735
    %1757 = vmatpush.bf16.msra.mxu0 %v1733
    %1758 = vmatpush.bf16.msra.mxu0 %v1731
    %1759 = vmatpush.bf16.msra.mxu0 %v1729
    %1760 = vmatpush.bf16.msra.mxu0 %v1727
    %1761 = vmatpush.bf16.msra.mxu0 %v1725
    %1762 = vmatpush.bf16.msra.mxu0 %v1723
    %1763 = vmatmul.bf16.gmra.mxu0 %v1673
    %v1764 = vpop.f32.mrf.mxu0
    %v1765 = vadd.f32 0.0, %v1764
    %v1766 = vpop.f32.mrf.mxu0
    %v1767 = vadd.f32 0.0, %v1766
    %1768 = vdwg.mxu0
    %1769 = vmatpush.bf16.msra.mxu0 %v1738
    %1770 = vmatpush.bf16.msra.mxu0 %v1736
    %1771 = vmatpush.bf16.msra.mxu0 %v1734
    %1772 = vmatpush.bf16.msra.mxu0 %v1732
    %1773 = vmatpush.bf16.msra.mxu0 %v1730
    %1774 = vmatpush.bf16.msra.mxu0 %v1728
    %1775 = vmatpush.bf16.msra.mxu0 %v1726
    %1776 = vmatpush.bf16.msra.mxu0 %v1724
    %1777 = vmatmul.bf16.gmra.mxu0 %v1673
    %v1778 = vpop.f32.mrf.mxu0
    %v1779 = vadd.f32 0.0, %v1778
    %v1780 = vpop.f32.mrf.mxu0
    %v1781 = vadd.f32 0.0, %v1780
    %1782 = vdwg.mxu0
    %v1783 = vadd.f32 %v1605, %v1765
    %v1784 = vadd.f32 %v1619, %v1779
    %v1785 = vadd.f32 %v1607, %v1767
    %v1786 = vadd.f32 %v1621, %v1781
    %v1787 = vmax.f32 %v1783, 0.0
    %v1788 = vmax.f32 %v1784, 0.0
    %v1789 = vmax.f32 %v1785, 0.0
    %v1790 = vmax.f32 %v1786, 0.0
    %v1791 = vpack.c.bf16 %v1789, %v1787
    %v1792 = vpack.c.bf16 %v1790, %v1788
    %v1793 = vld [vmem:[#allocation8] sm:$0xf]
    %v1794 = vld [vmem:[#allocation8 + $0x4] sm:$0xf]
    %v1795 = vld [vmem:[#allocation8 + $0x8] sm:$0xf]
    %v1796 = vld [vmem:[#allocation8 + $0xc] sm:$0xf]
    %v1797 = vld [vmem:[#allocation8 + $0x10] sm:$0xf]
    %v1798 = vld [vmem:[#allocation8 + $0x14] sm:$0xf]
    %v1799 = vld [vmem:[#allocation8 + $0x18] sm:$0xf]
    %v1800 = vld [vmem:[#allocation8 + $0x1c] sm:$0xf]
    %v1801 = vld [vmem:[#allocation8 + $0x20] sm:$0xf]
    %v1802 = vld [vmem:[#allocation8 + $0x24] sm:$0xf]
    %v1803 = vld [vmem:[#allocation8 + $0x28] sm:$0xf]
    %v1804 = vld [vmem:[#allocation8 + $0x2c] sm:$0xf]
    %v1805 = vld [vmem:[#allocation8 + $0x30] sm:$0xf]
    %v1806 = vld [vmem:[#allocation8 + $0x34] sm:$0xf]
    %v1807 = vld [vmem:[#allocation8 + $0x38] sm:$0xf]
    %v1808 = vld [vmem:[#allocation8 + $0x3c] sm:$0xf]
    %v1809 = vld [vmem:[#allocation8 + $0x40] sm:$0xf]
    %v1810 = vld [vmem:[#allocation8 + $0x44] sm:$0xf]
    %v1811 = vld [vmem:[#allocation8 + $0x48] sm:$0xf]
    %v1812 = vld [vmem:[#allocation8 + $0x4c] sm:$0xf]
    %v1813 = vld [vmem:[#allocation8 + $0x50] sm:$0xf]
    %v1814 = vld [vmem:[#allocation8 + $0x54] sm:$0xf]
    %v1815 = vld [vmem:[#allocation8 + $0x58] sm:$0xf]
    %v1816 = vld [vmem:[#allocation8 + $0x5c] sm:$0xf]
    %v1817 = vld [vmem:[#allocation8 + $0x60] sm:$0xf]
    %v1818 = vld [vmem:[#allocation8 + $0x64] sm:$0xf]
    %v1819 = vld [vmem:[#allocation8 + $0x68] sm:$0xf]
    %v1820 = vld [vmem:[#allocation8 + $0x6c] sm:$0xf]
    %v1821 = vld [vmem:[#allocation8 + $0x70] sm:$0xf]
    %v1822 = vld [vmem:[#allocation8 + $0x74] sm:$0xf]
    %v1823 = vld [vmem:[#allocation8 + $0x78] sm:$0xf]
    %v1824 = vld [vmem:[#allocation8 + $0x7c] sm:$0xf]
    %v1857 = vunpack.c.l.b16 %v1793
    %v1858 = vunpack.c.l.b16 %v1794
    %v1859 = vunpack.c.l.b16 %v1795
    %v1860 = vunpack.c.l.b16 %v1796
    %v1861 = vunpack.c.l.b16 %v1797
    %v1862 = vunpack.c.l.b16 %v1798
    %v1863 = vunpack.c.l.b16 %v1799
    %v1864 = vunpack.c.l.b16 %v1800
    %v1865 = vunpack.c.l.b16 %v1801
    %v1866 = vunpack.c.l.b16 %v1802
    %v1867 = vunpack.c.l.b16 %v1803
    %v1868 = vunpack.c.l.b16 %v1804
    %v1869 = vunpack.c.l.b16 %v1805
    %v1870 = vunpack.c.l.b16 %v1806
    %v1871 = vunpack.c.l.b16 %v1807
    %v1872 = vunpack.c.l.b16 %v1808
    %v1873 = vunpack.c.l.b16 %v1809
    %v1874 = vunpack.c.l.b16 %v1810
    %v1875 = vunpack.c.l.b16 %v1811
    %v1876 = vunpack.c.l.b16 %v1812
    %v1877 = vunpack.c.l.b16 %v1813
    %v1878 = vunpack.c.l.b16 %v1814
    %v1879 = vunpack.c.l.b16 %v1815
    %v1880 = vunpack.c.l.b16 %v1816
    %v1881 = vunpack.c.l.b16 %v1817
    %v1882 = vunpack.c.l.b16 %v1818
    %v1883 = vunpack.c.l.b16 %v1819
    %v1884 = vunpack.c.l.b16 %v1820
    %v1885 = vunpack.c.l.b16 %v1821
    %v1886 = vunpack.c.l.b16 %v1822
    %v1887 = vunpack.c.l.b16 %v1823
    %v1888 = vunpack.c.l.b16 %v1824
    %v1889 = vpack.c.b16 %v1858, %v1857
    %v1890 = vpack.c.b16 %v1860, %v1859
    %v1891 = vpack.c.b16 %v1862, %v1861
    %v1892 = vpack.c.b16 %v1864, %v1863
    %v1893 = vpack.c.b16 %v1866, %v1865
    %v1894 = vpack.c.b16 %v1868, %v1867
    %v1895 = vpack.c.b16 %v1870, %v1869
    %v1896 = vpack.c.b16 %v1872, %v1871
    %v1897 = vpack.c.b16 %v1874, %v1873
    %v1898 = vpack.c.b16 %v1876, %v1875
    %v1899 = vpack.c.b16 %v1878, %v1877
    %v1900 = vpack.c.b16 %v1880, %v1879
    %v1901 = vpack.c.b16 %v1882, %v1881
    %v1902 = vpack.c.b16 %v1884, %v1883
    %v1903 = vpack.c.b16 %v1886, %v1885
    %v1904 = vpack.c.b16 %v1888, %v1887
    %1921 = vmatpush.bf16.msra.mxu0 %v1896
    %1922 = vmatpush.bf16.msra.mxu0 %v1895
    %1923 = vmatpush.bf16.msra.mxu0 %v1894
    %1924 = vmatpush.bf16.msra.mxu0 %v1893
    %1925 = vmatpush.bf16.msra.mxu0 %v1892
    %1926 = vmatpush.bf16.msra.mxu0 %v1891
    %1927 = vmatpush.bf16.msra.mxu0 %v1890
    %1928 = vmatpush.bf16.msra.mxu0 %v1889
    %1929 = vmatmul.bf16.gmra.mxu0 %v1791
    %v1930 = vpop.f32.mrf.mxu0
    %v1931 = vadd.f32 0.0, %v1930
    %v1932 = vpop.f32.mrf.mxu0
    %v1933 = vadd.f32 0.0, %v1932
    %1934 = vdwg.mxu0
    %1935 = vmatpush.bf16.msra.mxu0 %v1904
    %1936 = vmatpush.bf16.msra.mxu0 %v1903
    %1937 = vmatpush.bf16.msra.mxu0 %v1902
    %1938 = vmatpush.bf16.msra.mxu0 %v1901
    %1939 = vmatpush.bf16.msra.mxu0 %v1900
    %1940 = vmatpush.bf16.msra.mxu0 %v1899
    %1941 = vmatpush.bf16.msra.mxu0 %v1898
    %1942 = vmatpush.bf16.msra.mxu0 %v1897
    %1943 = vmatmul.bf16.gmra.mxu0 %v1792
    %v1944 = vpop.f32.mrf.mxu0
    %v1945 = vadd.f32 %v1931, %v1944
    %v1946 = vpop.f32.mrf.mxu0
    %v1947 = vadd.f32 %v1933, %v1946
    %1948 = vdwg.mxu0
    %v1949 = vadd.f32 %v1327, %v1945
    %v1950 = vadd.f32 %v1328, %v1947
    %v1951 = vmax.f32 %v1949, 0.0
    %v1952 = vmax.f32 %v1950, 0.0
    %1953 = vst [vmem:[#allocation9] sm:$0xff] %v1951
    %1954 = vst [vmem:[#allocation9 + $0x8] sm:$0xff] %v1952
    // Predicated region
    $region30: #{tpu_custom_call.1} parent=1 // pred_check
      _
    $region31: #{tpu_custom_call.1} parent=1 // pred_check_branch
      %1956 = sbr.rel (0) target = $region33
    $region32: #{tpu_custom_call.1} parent=1 // pred_region
      %1958 = vsyncadd [#allocation5], 0
      %s1959 = sshll.u32 [#allocation9], 4
      %s1960 = int_to_ptr.vmem [resolvable:$true] %s1959
      %s1961 = sshll.u32 %s3, 4
      %s1962 = int_to_ptr.hbm [resolvable:$true] %s1961
      %1967 = dma.vmem_to_hbm [thread:$0]  %s1960, 256, %s1962, [#allocation5], 128, 128, 8
    $region33: #{tpu_custom_call.1} parent=1 // pred_fallthru
      _
    // Predicated region
    $region34: #{tpu_custom_call.1} parent=1 // pred_check
      _
    $region35: #{tpu_custom_call.1} parent=1 // pred_check_branch
      %1969 = sbr.rel (0) target = $region37
    $region36: #{tpu_custom_call.1} parent=1 // pred_region
      %1971 = dma.done [#allocation5], 256
    $region37: #{tpu_custom_call.1} parent=1 // pred_fallthru
      _
    %1972 = vsyncpa [#allocation4], 1
    %1973 = vsyncpa [#allocation7], 1
    %1974 = vsyncpa [#allocation5], 1

</llo_original>
